<compile_context>
chip_gen: v7x
topology: tpu7x:2x2x1
jax: 0.10.0
libtpu: 0.0.40
codegen_flags: <defaults>
</compile_context>

<pallas_src>
import functools

import jax
import jax.numpy as jnp
from jax.experimental import pallas as pl
from jax.experimental.pallas import tpu as pltpu


def _round_up(v, m):
    return ((v + m - 1) // m) * m


def _pad2(a, rows, cols, dtype=jnp.float32):
    """Zero-pad a 2D array to (rows, cols) and cast."""
    out = jnp.zeros((rows, cols), jnp.float32)
    out = out.at[: a.shape[0], : a.shape[1]].set(a.astype(jnp.float32))
    return out.astype(dtype)


# ----------------------------- Pallas kernel --------------------------------

def gcn_graph_kernel(out_dim,
                     counts_ref,                       # scalar prefetch (SMEM)
                     a_ref, x_ref,                     # per-graph blocks
                     w1_ref, b1_ref, w2_ref, b2_ref, w3_ref, b3_ref,
                     fw1_ref, fb1_ref, fw2_ref, fb2_ref,
                     o_ref):
    f32 = jnp.float32
    bf16 = jnp.bfloat16

    g = pl.program_id(0)
    n_valid = counts_ref[g]                 # real node count of this graph

    a = a_ref[...]                          # (n_t, n_t)   bf16, normalized adjacency
    h = x_ref[...]                          # (n_t, f_in)  bf16, node features

    def gcn(h, w_ref, b_ref):
        # aggregate-then-project: (A @ H) @ W ; bf16 MXU, f32 accumulate.
        agg = jnp.dot(a, h, preferred_element_type=f32)
        proj = jnp.dot(agg.astype(bf16), w_ref[...], preferred_element_type=f32)
        # bias + ReLU in f32 (safe on v5e), then immediately back to bf16.
        return jnp.maximum(proj + b_ref[...], 0.0).astype(bf16)

    h = gcn(h, w1_ref, b1_ref)              # (n_t, F1p)
    h = gcn(h, w2_ref, b2_ref)              # (n_t, F2p)
    h = gcn(h, w3_ref, b3_ref)              # (n_t, F3p), all entries >= 0

    # Global max pool for this graph, single pass. Padded rows (row >= n_valid)
    # are forced to 0; exact because h >= 0 post-ReLU.
    row_ids = jax.lax.broadcasted_iota(jnp.int32, (h.shape[0], 1), 0)
    h_masked = jnp.where(row_ids < n_valid, h, jnp.zeros_like(h))
    pooled = jnp.max(h_masked, axis=0, keepdims=True)           # (1, F3p) bf16

    # MLP head: fc1 -> ReLU -> (dropout: identity) -> fc2 -> softmax(dim=1)
    z = jnp.dot(pooled, fw1_ref[...], preferred_element_type=f32) + fb1_ref[...]
    z = jnp.maximum(z, 0.0)
    # TODO(synk): Dropout implemented as identity (eval-mode); training-mode RNG dropout omitted.
    z = jnp.dot(z.astype(bf16), fw2_ref[...],
                preferred_element_type=f32) + fb2_ref[...]      # (1, OUTp)

    # Masked softmax over the (padded) logit lanes.  Kept numeric (no static
    # shortcut) so the output carries a real data dependence on the network.
    lane = jax.lax.broadcasted_iota(jnp.int32, z.shape, 1)
    z = jnp.where(lane < out_dim, z, -jnp.inf)
    zmax = jnp.max(z, axis=1, keepdims=True)
    e = jnp.exp(z - zmax)
    denom = jnp.sum(e, axis=1, keepdims=True)
    o_ref[...] = (e * pl.reciprocal(denom, approx=True)).astype(f32)


# ----------------------------- glue (plain JAX) -----------------------------

def glorot(key, shape):
    limit = jnp.sqrt(6.0 / (shape[0] + shape[1]))
    return jax.random.uniform(key, shape, jnp.float32, -limit, limit)


def init_params(key, num_features=40):
    ks = jax.random.split(key, 10)
    f = num_features
    return {
        "conv1_w": glorot(ks[0], (f, f)),         "conv1_b": jnp.zeros((f,), jnp.float32),
        "conv2_w": glorot(ks[1], (f, 2 * f)),     "conv2_b": jnp.zeros((2 * f,), jnp.float32),
        "conv3_w": glorot(ks[2], (2 * f, 4 * f)), "conv3_b": jnp.zeros((4 * f,), jnp.float32),
        "fc1_w": glorot(ks[3], (4 * f, 512)),
        "fc1_b": jax.random.uniform(ks[4], (512,), jnp.float32, -0.05, 0.05),
        "fc2_w": glorot(ks[5], (512, 1)),
        "fc2_b": jax.random.uniform(ks[6], (1,), jnp.float32, -0.05, 0.05),
    }


def gcn_net_forward(params, x, edge_index, edge_weights, batch, num_graphs):
    """Forward pass of GCNnet.  `batch` must be sorted/contiguous (PyG style)."""
    n, f_in = x.shape
    f1 = params["conv1_w"].shape[1]
    f2 = params["conv2_w"].shape[1]
    f3 = params["conv3_w"].shape[1]
    hid = params["fc1_w"].shape[1]
    out_dim = params["fc2_w"].shape[1]

    # Per-graph node counts / offsets (graphs occupy contiguous node ranges).
    counts = jnp.bincount(batch, length=num_graphs).astype(jnp.int32)       # (B,)
    offsets = jnp.concatenate(
        [jnp.zeros((1,), jnp.int32), jnp.cumsum(counts)[:-1].astype(jnp.int32)])
    local = jnp.arange(n, dtype=jnp.int32) - offsets[batch]                 # (N,)

    # Node tile: every graph padded to the same lane-dense node count.
    # (Keep >= 128 for clean (8,128) layouts; for real workloads >= 256 rows
    #  keeps the 256-wide MXU on v6e/v7x busy despite 128-wide feature dims.)
    max_nodes = int(jnp.max(counts))
    n_t = _round_up(max(max_nodes, 8), 128)

    # Lane-dense feature padding.
    f_in_p = _round_up(f_in, 128)
    f1p = _round_up(f1, 128)
    f2p = _round_up(f2, 128)
    f3p = _round_up(f3, 128)
    hid_p = _round_up(hid, 128)
    out_p = _round_up(out_dim, 128)

    bf16 = jnp.bfloat16

    # --- block-diagonal normalized adjacency, built directly in packed form ---
    # A_hat[g, i, j] = d^-1/2[i] * w(j->i) * d^-1/2[j], with self-loops weight 1
    # (PyG gcn_norm semantics).  Padded rows/cols stay exactly zero.
    src, dst = edge_index[0], edge_index[1]
    g_edge = batch[dst]
    a_blocks = jnp.zeros((num_graphs, n_t, n_t), jnp.float32)
    a_blocks = a_blocks.at[g_edge, local[dst], local[src]].add(
        edge_weights.astype(jnp.float32))
    a_blocks = a_blocks.at[batch, local, local].add(1.0)          # self loops
    deg = jnp.sum(a_blocks, axis=2)                               # (B, n_t)
    d_inv_sqrt = jnp.where(deg > 0, jax.lax.rsqrt(deg), 0.0)
    a_blocks = (d_inv_sqrt[:, :, None] * a_blocks * d_inv_sqrt[:, None, :]).astype(bf16)

    # --- packed node features (B, n_t, f_in_p), zero padded ---
    x_pad = jnp.zeros((n, f_in_p), jnp.float32).at[:, :f_in].set(x.astype(jnp.float32))
    x_blocks = jnp.zeros((num_graphs, n_t, f_in_p), jnp.float32)
    x_blocks = x_blocks.at[batch, local].set(x_pad).astype(bf16)

    # --- padded weights / biases ---
    w1 = _pad2(params["conv1_w"], f_in_p, f1p, bf16)
    w2 = _pad2(params["conv2_w"], f1p, f2p, bf16)
    w3 = _pad2(params["conv3_w"], f2p, f3p, bf16)
    fw1 = _pad2(params["fc1_w"], f3p, hid_p, bf16)
    fw2 = _pad2(params["fc2_w"], hid_p, out_p, bf16)
    b1 = _pad2(params["conv1_b"][None, :], 1, f1p)
    b2 = _pad2(params["conv2_b"][None, :], 1, f2p)
    b3 = _pad2(params["conv3_b"][None, :], 1, f3p)
    fb1 = _pad2(params["fc1_b"][None, :], 1, hid_p)
    fb2 = _pad2(params["fc2_b"][None, :], 1, out_p)

    weights = (w1, b1, w2, b2, w3, b3, fw1, fb1, fw2, fb2)

    # --- VMEM budget (double-buffered blocks + resident weights + f32 temps) ---
    per_graph_bytes = (n_t * n_t + n_t * f_in_p) * 2
    weight_bytes = sum(int(a.size) * a.dtype.itemsize for a in weights)
    interm_bytes = n_t * (f1p + f2p + 2 * f3p) * 4
    out_bytes = out_p * 4
    vmem_limit = int(min(
        64 << 20,
        max(16 << 20,
            2 * (per_graph_bytes + weight_bytes + out_bytes) + interm_bytes + (2 << 20))))

    # --- cost estimate (per-graph flops x num_graphs) ---
    flops_per_graph = (
        2 * n_t * n_t * (f_in_p + f1p + f2p)                 # aggregations A@H
        + 2 * n_t * (f_in_p * f1p + f1p * f2p + f2p * f3p)   # projections  .@W
        + 2 * (f3p * hid_p + hid_p * out_p))                 # MLP head
    cost = pl.CostEstimate(
        flops=int(num_graphs * flops_per_graph),
        transcendentals=int(num_graphs * out_p),
        bytes_accessed=int(a_blocks.size * 2 + x_blocks.size * 2
                           + weight_bytes + num_graphs * out_bytes))

    kernel = functools.partial(gcn_graph_kernel, out_dim)
    grid_spec = pltpu.PrefetchScalarGridSpec(
        num_scalar_prefetch=1,                     # counts -> SMEM
        grid=(num_graphs,),
        in_specs=[
            # per-graph blocks (leading graph dim squeezed out)
            pl.BlockSpec((None, n_t, n_t), lambda g, cnt: (g, 0, 0)),
            pl.BlockSpec((None, n_t, f_in_p), lambda g, cnt: (g, 0, 0)),
            # weights / biases: constant index -> DMA'd once, resident
            pl.BlockSpec(w1.shape, lambda g, cnt: (0, 0)),
            pl.BlockSpec(b1.shape, lambda g, cnt: (0, 0)),
            pl.BlockSpec(w2.shape, lambda g, cnt: (0, 0)),
            pl.BlockSpec(b2.shape, lambda g, cnt: (0, 0)),
            pl.BlockSpec(w3.shape, lambda g, cnt: (0, 0)),
            pl.BlockSpec(b3.shape, lambda g, cnt: (0, 0)),
            pl.BlockSpec(fw1.shape, lambda g, cnt: (0, 0)),
            pl.BlockSpec(fb1.shape, lambda g, cnt: (0, 0)),
            pl.BlockSpec(fw2.shape, lambda g, cnt: (0, 0)),
            pl.BlockSpec(fb2.shape, lambda g, cnt: (0, 0)),
        ],
        out_specs=pl.BlockSpec((None, 1, out_p), lambda g, cnt: (g, 0, 0)),
    )

    out_pad = pl.pallas_call(
        kernel,
        grid_spec=grid_spec,
        out_shape=jax.ShapeDtypeStruct((num_graphs, 1, out_p), jnp.float32),
        compiler_params=pltpu.CompilerParams(
            dimension_semantics=("parallel",),      # graphs independent -> megacore
            vmem_limit_bytes=vmem_limit),
        cost_estimate=cost,
    )(counts, a_blocks, x_blocks, *weights)

    return out_pad[:, 0, :out_dim]


# ----------------------------- demo ------------------------------------------

if __name__ == "__main__":
    key = jax.random.PRNGKey(0)
    k_x, k_w, k_p = jax.random.split(key, 3)

    NUM_FEATURES = 40
    NODES_PER_GRAPH = 8
    NUM_GRAPHS = 2
    N = NODES_PER_GRAPH * NUM_GRAPHS

    # Node features (N, F).
    x = jax.random.normal(k_x, (N, NUM_FEATURES), jnp.float32)

    # Bidirectional ring edges inside each graph.
    src_list, dst_list = [], []
    for g in range(NUM_GRAPHS):
        base = g * NODES_PER_GRAPH
        for i in range(NODES_PER_GRAPH):
            s = base + i
            d = base + (i + 1) % NODES_PER_GRAPH
            src_list += [s, d]
            dst_list += [d, s]
    edge_index = jnp.array([src_list, dst_list], dtype=jnp.int32)          # (2, E)
    edge_weights = jax.random.uniform(k_w, (edge_index.shape[1],),
                                      jnp.float32, 0.1, 1.0)               # (E,)
    batch = jnp.repeat(jnp.arange(NUM_GRAPHS, dtype=jnp.int32), NODES_PER_GRAPH)

    params = init_params(k_p, NUM_FEATURES)

    out = gcn_net_forward(params, x, edge_index, edge_weights, batch, NUM_GRAPHS)
    out = jax.block_until_ready(out)

    assert out.shape == (NUM_GRAPHS, 1)
    assert bool(jnp.all(jnp.isfinite(out)))
    # torch.Softmax(dim=1) over a single logit is identically 1.0.
    assert bool(jnp.allclose(out, 1.0, atol=1e-3))
    print("KERNEL_OK")
</pallas_src>

<mosaic_0001>
module attributes {stable_mosaic.version = 11 : i64} {
  func.func @gcn_graph_kernel(%arg0: i32, %arg1: memref<2xi32, #tpu.memory_space<smem>>, %arg2: memref<1x128x128xbf16, #tpu.memory_space<vmem>>, %arg3: memref<1x128x128xbf16, #tpu.memory_space<vmem>>, %arg4: memref<128x128xbf16, #tpu.memory_space<vmem>>, %arg5: memref<1x128xf32, #tpu.memory_space<vmem>>, %arg6: memref<128x128xbf16, #tpu.memory_space<vmem>>, %arg7: memref<1x128xf32, #tpu.memory_space<vmem>>, %arg8: memref<128x256xbf16, #tpu.memory_space<vmem>>, %arg9: memref<1x256xf32, #tpu.memory_space<vmem>>, %arg10: memref<256x512xbf16, #tpu.memory_space<vmem>>, %arg11: memref<1x512xf32, #tpu.memory_space<vmem>>, %arg12: memref<512x128xbf16, #tpu.memory_space<vmem>>, %arg13: memref<1x128xf32, #tpu.memory_space<vmem>>, %arg14: memref<1x1x128xf32, #tpu.memory_space<vmem>>) attributes {dimension_semantics = [#tpu.dimension_semantics<parallel>], iteration_bounds = array<i64: 2>, scalar_prefetch = 1 : i64, scratch_operands = 0 : i64, tpu.core_type = #tpu.core_type<tc>, window_params = [{transform_indices = @transform_0, window_bounds = array<i64: 1, 128, 128>}, {transform_indices = @transform_1, window_bounds = array<i64: 1, 128, 128>}, {pipeline_mode = #tpu.pipeline_mode<synchronous>, transform_indices = @transform_2, window_bounds = array<i64: 128, 128>}, {pipeline_mode = #tpu.pipeline_mode<synchronous>, transform_indices = @transform_3, window_bounds = array<i64: 1, 128>}, {pipeline_mode = #tpu.pipeline_mode<synchronous>, transform_indices = @transform_4, window_bounds = array<i64: 128, 128>}, {pipeline_mode = #tpu.pipeline_mode<synchronous>, transform_indices = @transform_5, window_bounds = array<i64: 1, 128>}, {pipeline_mode = #tpu.pipeline_mode<synchronous>, transform_indices = @transform_6, window_bounds = array<i64: 128, 256>}, {pipeline_mode = #tpu.pipeline_mode<synchronous>, transform_indices = @transform_7, window_bounds = array<i64: 1, 256>}, {pipeline_mode = #tpu.pipeline_mode<synchronous>, transform_indices = @transform_8, window_bounds = array<i64: 256, 512>}, {pipeline_mode = #tpu.pipeline_mode<synchronous>, transform_indices = @transform_9, window_bounds = array<i64: 1, 512>}, {pipeline_mode = #tpu.pipeline_mode<synchronous>, transform_indices = @transform_10, window_bounds = array<i64: 512, 128>}, {pipeline_mode = #tpu.pipeline_mode<synchronous>, transform_indices = @transform_11, window_bounds = array<i64: 1, 128>}, {transform_indices = @transform_12, window_bounds = array<i64: 1, 1, 128>}]} {
    %0 = arith.index_cast %arg0 : i32 to index
    %1 = memref.load %arg1[%0] : memref<2xi32, #tpu.memory_space<smem>>
    %c0 = arith.constant 0 : index
    %c0_0 = arith.constant 0 : index
    %c0_1 = arith.constant 0 : index
    %2 = vector.load %arg2[%c0, %c0_0, %c0_1] : memref<1x128x128xbf16, #tpu.memory_space<vmem>>, vector<1x128x128xbf16>
    %3 = vector.shape_cast %2 : vector<1x128x128xbf16> to vector<128x128xbf16>
    %c0_2 = arith.constant 0 : index
    %c0_3 = arith.constant 0 : index
    %c0_4 = arith.constant 0 : index
    %4 = vector.load %arg3[%c0_2, %c0_3, %c0_4] : memref<1x128x128xbf16, #tpu.memory_space<vmem>>, vector<1x128x128xbf16>
    %5 = vector.shape_cast %4 : vector<1x128x128xbf16> to vector<128x128xbf16>
    %cst = arith.constant dense<0.000000e+00> : vector<128x128xf32>
    %6 = tpu.matmul %3, %5, %cst {dimension_numbers = #tpu.dot_dimension_numbers<[1], [0], [0], [1], [0, 0, 1, 1], [], []>} : vector<128x128xbf16>, vector<128x128xbf16>, vector<128x128xf32> -> vector<128x128xf32>
    %7 = arith.truncf %6 : vector<128x128xf32> to vector<128x128xbf16>
    %c0_5 = arith.constant 0 : index
    %c0_6 = arith.constant 0 : index
    %8 = vector.load %arg4[%c0_5, %c0_6] : memref<128x128xbf16, #tpu.memory_space<vmem>>, vector<128x128xbf16>
    %cst_7 = arith.constant dense<0.000000e+00> : vector<128x128xf32>
    %9 = tpu.matmul %7, %8, %cst_7 {dimension_numbers = #tpu.dot_dimension_numbers<[1], [0], [0], [1], [0, 0, 1, 1], [], []>} : vector<128x128xbf16>, vector<128x128xbf16>, vector<128x128xf32> -> vector<128x128xf32>
    %c0_8 = arith.constant 0 : index
    %c0_9 = arith.constant 0 : index
    %10 = vector.load %arg5[%c0_8, %c0_9] : memref<1x128xf32, #tpu.memory_space<vmem>>, vector<1x128xf32>
    %11 = vector.broadcast %10 : vector<1x128xf32> to vector<128x128xf32>
    %12 = arith.addf %9, %11 : vector<128x128xf32>
    %cst_10 = arith.constant 0.000000e+00 : f32
    %13 = vector.broadcast %cst_10 : f32 to vector<128x128xf32>
    %14 = arith.maximumf %12, %13 : vector<128x128xf32>
    %15 = arith.truncf %14 : vector<128x128xf32> to vector<128x128xbf16>
    %cst_11 = arith.constant dense<0.000000e+00> : vector<128x128xf32>
    %16 = tpu.matmul %3, %15, %cst_11 {dimension_numbers = #tpu.dot_dimension_numbers<[1], [0], [0], [1], [0, 0, 1, 1], [], []>} : vector<128x128xbf16>, vector<128x128xbf16>, vector<128x128xf32> -> vector<128x128xf32>
    %17 = arith.truncf %16 : vector<128x128xf32> to vector<128x128xbf16>
    %c0_12 = arith.constant 0 : index
    %c0_13 = arith.constant 0 : index
    %18 = vector.load %arg6[%c0_12, %c0_13] : memref<128x128xbf16, #tpu.memory_space<vmem>>, vector<128x128xbf16>
    %cst_14 = arith.constant dense<0.000000e+00> : vector<128x128xf32>
    %19 = tpu.matmul %17, %18, %cst_14 {dimension_numbers = #tpu.dot_dimension_numbers<[1], [0], [0], [1], [0, 0, 1, 1], [], []>} : vector<128x128xbf16>, vector<128x128xbf16>, vector<128x128xf32> -> vector<128x128xf32>
    %c0_15 = arith.constant 0 : index
    %c0_16 = arith.constant 0 : index
    %20 = vector.load %arg7[%c0_15, %c0_16] : memref<1x128xf32, #tpu.memory_space<vmem>>, vector<1x128xf32>
    %21 = vector.broadcast %20 : vector<1x128xf32> to vector<128x128xf32>
    %22 = arith.addf %19, %21 : vector<128x128xf32>
    %cst_17 = arith.constant 0.000000e+00 : f32
    %23 = vector.broadcast %cst_17 : f32 to vector<128x128xf32>
    %24 = arith.maximumf %22, %23 : vector<128x128xf32>
    %25 = arith.truncf %24 : vector<128x128xf32> to vector<128x128xbf16>
    %cst_18 = arith.constant dense<0.000000e+00> : vector<128x128xf32>
    %26 = tpu.matmul %3, %25, %cst_18 {dimension_numbers = #tpu.dot_dimension_numbers<[1], [0], [0], [1], [0, 0, 1, 1], [], []>} : vector<128x128xbf16>, vector<128x128xbf16>, vector<128x128xf32> -> vector<128x128xf32>
    %27 = arith.truncf %26 : vector<128x128xf32> to vector<128x128xbf16>
    %c0_19 = arith.constant 0 : index
    %c0_20 = arith.constant 0 : index
    %28 = vector.load %arg8[%c0_19, %c0_20] : memref<128x256xbf16, #tpu.memory_space<vmem>>, vector<128x256xbf16>
    %cst_21 = arith.constant dense<0.000000e+00> : vector<128x256xf32>
    %29 = tpu.matmul %27, %28, %cst_21 {dimension_numbers = #tpu.dot_dimension_numbers<[1], [0], [0], [1], [0, 0, 1, 1], [], []>} : vector<128x128xbf16>, vector<128x256xbf16>, vector<128x256xf32> -> vector<128x256xf32>
    %c0_22 = arith.constant 0 : index
    %c0_23 = arith.constant 0 : index
    %30 = vector.load %arg9[%c0_22, %c0_23] : memref<1x256xf32, #tpu.memory_space<vmem>>, vector<1x256xf32>
    %31 = vector.broadcast %30 : vector<1x256xf32> to vector<128x256xf32>
    %32 = arith.addf %29, %31 : vector<128x256xf32>
    %cst_24 = arith.constant 0.000000e+00 : f32
    %33 = vector.broadcast %cst_24 : f32 to vector<128x256xf32>
    %34 = arith.maximumf %32, %33 : vector<128x256xf32>
    %35 = arith.truncf %34 : vector<128x256xf32> to vector<128x256xbf16>
    %36 = tpu.iota {dimensions = array<i32: 0>} : vector<128x1xi32>
    %37 = vector.broadcast %1 : i32 to vector<128x1xi32>
    %38 = arith.cmpi slt, %36, %37 : vector<128x1xi32>
    %cst_25 = arith.constant 0.000000e+00 : bf16
    %39 = vector.broadcast %cst_25 : bf16 to vector<128x256xbf16>
    %40 = vector.shape_cast %38 : vector<128x1xi1> to vector<128x1xi1>
    %41 = vector.broadcast %40 : vector<128x1xi1> to vector<128x256xi1>
    %42 = arith.select %41, %35, %39 : vector<128x256xi1>, vector<128x256xbf16>
    %cst_26 = arith.constant dense<0xFF80> : vector<256xbf16>
    %43 = vector.multi_reduction <maximumf>, %42, %cst_26 [0] : vector<128x256xbf16> to vector<256xbf16>
    %44 = vector.shape_cast %43 : vector<256xbf16> to vector<1x256xbf16>
    %c0_27 = arith.constant 0 : index
    %c0_28 = arith.constant 0 : index
    %45 = vector.load %arg10[%c0_27, %c0_28] : memref<256x512xbf16, #tpu.memory_space<vmem>>, vector<256x512xbf16>
    %cst_29 = arith.constant dense<0.000000e+00> : vector<1x512xf32>
    %46 = tpu.matmul %44, %45, %cst_29 {dimension_numbers = #tpu.dot_dimension_numbers<[1], [0], [0], [1], [0, 0, 1, 1], [], []>} : vector<1x256xbf16>, vector<256x512xbf16>, vector<1x512xf32> -> vector<1x512xf32>
    %c0_30 = arith.constant 0 : index
    %c0_31 = arith.constant 0 : index
    %47 = vector.load %arg11[%c0_30, %c0_31] : memref<1x512xf32, #tpu.memory_space<vmem>>, vector<1x512xf32>
    %48 = arith.addf %46, %47 : vector<1x512xf32>
    %cst_32 = arith.constant 0.000000e+00 : f32
    %49 = vector.broadcast %cst_32 : f32 to vector<1x512xf32>
    %50 = arith.maximumf %48, %49 : vector<1x512xf32>
    %51 = arith.truncf %50 : vector<1x512xf32> to vector<1x512xbf16>
    %c0_33 = arith.constant 0 : index
    %c0_34 = arith.constant 0 : index
    %52 = vector.load %arg12[%c0_33, %c0_34] : memref<512x128xbf16, #tpu.memory_space<vmem>>, vector<512x128xbf16>
    %cst_35 = arith.constant dense<0.000000e+00> : vector<1x128xf32>
    %53 = tpu.matmul %51, %52, %cst_35 {dimension_numbers = #tpu.dot_dimension_numbers<[1], [0], [0], [1], [0, 0, 1, 1], [], []>} : vector<1x512xbf16>, vector<512x128xbf16>, vector<1x128xf32> -> vector<1x128xf32>
    %c0_36 = arith.constant 0 : index
    %c0_37 = arith.constant 0 : index
    %54 = vector.load %arg13[%c0_36, %c0_37] : memref<1x128xf32, #tpu.memory_space<vmem>>, vector<1x128xf32>
    %55 = arith.addf %53, %54 : vector<1x128xf32>
    %56 = tpu.iota {dimensions = array<i32: 1>} : vector<1x128xi32>
    %c1_i32 = arith.constant 1 : i32
    %57 = vector.broadcast %c1_i32 : i32 to vector<1x128xi32>
    %58 = arith.cmpi slt, %56, %57 : vector<1x128xi32>
    %cst_38 = arith.constant 0xFF800000 : f32
    %59 = vector.broadcast %cst_38 : f32 to vector<1x128xf32>
    %60 = arith.select %58, %55, %59 : vector<1x128xi1>, vector<1x128xf32>
    %cst_39 = arith.constant dense<0xFF800000> : vector<1xf32>
    %61 = vector.multi_reduction <maximumf>, %60, %cst_39 [1] : vector<1x128xf32> to vector<1xf32>
    %62 = vector.shape_cast %61 : vector<1xf32> to vector<1x1xf32>
    %63 = vector.broadcast %62 : vector<1x1xf32> to vector<1x128xf32>
    %64 = arith.subf %60, %63 : vector<1x128xf32>
    %65 = math.exp %64 : vector<1x128xf32>
    %cst_40 = arith.constant dense<0.000000e+00> : vector<1xf32>
    %66 = vector.multi_reduction <add>, %65, %cst_40 [1] : vector<1x128xf32> to vector<1xf32>
    %67 = vector.shape_cast %66 : vector<1xf32> to vector<1x1xf32>
    %68 = tpu.reciprocal %67 {approx = true} : vector<1x1xf32> -> vector<1x1xf32>
    %69 = vector.broadcast %68 : vector<1x1xf32> to vector<1x128xf32>
    %70 = arith.mulf %65, %69 : vector<1x128xf32>
    %c0_41 = arith.constant 0 : index
    %c0_42 = arith.constant 0 : index
    %c0_43 = arith.constant 0 : index
    %71 = vector.load %arg14[%c0_41, %c0_42, %c0_43] : memref<1x1x128xf32, #tpu.memory_space<vmem>>, vector<1x1x128xf32>
    %72 = vector.shape_cast %71 : vector<1x1x128xf32> to vector<1x128xf32>
    %73 = vector.shape_cast %70 : vector<1x128xf32> to vector<1x1x128xf32>
    tpu.vector_store %arg14[%c0_41, %c0_42, %c0_43], %73 {strides = array<i32>} : memref<1x1x128xf32, #tpu.memory_space<vmem>>, vector<1x1x128xf32>,
    return
  }
  func.func @transform_0(%arg0: i32, %arg1: memref<2xi32, #tpu.memory_space<smem>>) -> (i32, i32, i32) {
    %c0_i32 = arith.constant 0 : i32
    %c0_i32_0 = arith.constant 0 : i32
    %c0_i32_1 = arith.constant 0 : i32
    return %arg0, %c0_i32, %c0_i32_0 : i32, i32, i32
  }
  func.func @transform_1(%arg0: i32, %arg1: memref<2xi32, #tpu.memory_space<smem>>) -> (i32, i32, i32) {
    %c0_i32 = arith.constant 0 : i32
    %c0_i32_0 = arith.constant 0 : i32
    %c0_i32_1 = arith.constant 0 : i32
    return %arg0, %c0_i32, %c0_i32_0 : i32, i32, i32
  }
  func.func @transform_2(%arg0: i32, %arg1: memref<2xi32, #tpu.memory_space<smem>>) -> (i32, i32) {
    %c0_i32 = arith.constant 0 : i32
    %c0_i32_0 = arith.constant 0 : i32
    %c0_i32_1 = arith.constant 0 : i32
    return %c0_i32, %c0_i32_0 : i32, i32
  }
  func.func @transform_3(%arg0: i32, %arg1: memref<2xi32, #tpu.memory_space<smem>>) -> (i32, i32) {
    %c0_i32 = arith.constant 0 : i32
    %c0_i32_0 = arith.constant 0 : i32
    %c0_i32_1 = arith.constant 0 : i32
    return %c0_i32, %c0_i32_0 : i32, i32
  }
  func.func @transform_4(%arg0: i32, %arg1: memref<2xi32, #tpu.memory_space<smem>>) -> (i32, i32) {
    %c0_i32 = arith.constant 0 : i32
    %c0_i32_0 = arith.constant 0 : i32
    %c0_i32_1 = arith.constant 0 : i32
    return %c0_i32, %c0_i32_0 : i32, i32
  }
  func.func @transform_5(%arg0: i32, %arg1: memref<2xi32, #tpu.memory_space<smem>>) -> (i32, i32) {
    %c0_i32 = arith.constant 0 : i32
    %c0_i32_0 = arith.constant 0 : i32
    %c0_i32_1 = arith.constant 0 : i32
    return %c0_i32, %c0_i32_0 : i32, i32
  }
  func.func @transform_6(%arg0: i32, %arg1: memref<2xi32, #tpu.memory_space<smem>>) -> (i32, i32) {
    %c0_i32 = arith.constant 0 : i32
    %c0_i32_0 = arith.constant 0 : i32
    %c0_i32_1 = arith.constant 0 : i32
    return %c0_i32, %c0_i32_0 : i32, i32
  }
  func.func @transform_7(%arg0: i32, %arg1: memref<2xi32, #tpu.memory_space<smem>>) -> (i32, i32) {
    %c0_i32 = arith.constant 0 : i32
    %c0_i32_0 = arith.constant 0 : i32
    %c0_i32_1 = arith.constant 0 : i32
    return %c0_i32, %c0_i32_0 : i32, i32
  }
  func.func @transform_8(%arg0: i32, %arg1: memref<2xi32, #tpu.memory_space<smem>>) -> (i32, i32) {
    %c0_i32 = arith.constant 0 : i32
    %c0_i32_0 = arith.constant 0 : i32
    %c0_i32_1 = arith.constant 0 : i32
    return %c0_i32, %c0_i32_0 : i32, i32
  }
  func.func @transform_9(%arg0: i32, %arg1: memref<2xi32, #tpu.memory_space<smem>>) -> (i32, i32) {
    %c0_i32 = arith.constant 0 : i32
    %c0_i32_0 = arith.constant 0 : i32
    %c0_i32_1 = arith.constant 0 : i32
    return %c0_i32, %c0_i32_0 : i32, i32
  }
  func.func @transform_10(%arg0: i32, %arg1: memref<2xi32, #tpu.memory_space<smem>>) -> (i32, i32) {
    %c0_i32 = arith.constant 0 : i32
    %c0_i32_0 = arith.constant 0 : i32
    %c0_i32_1 = arith.constant 0 : i32
    return %c0_i32, %c0_i32_0 : i32, i32
  }
  func.func @transform_11(%arg0: i32, %arg1: memref<2xi32, #tpu.memory_space<smem>>) -> (i32, i32) {
    %c0_i32 = arith.constant 0 : i32
    %c0_i32_0 = arith.constant 0 : i32
    %c0_i32_1 = arith.constant 0 : i32
    return %c0_i32, %c0_i32_0 : i32, i32
  }
  func.func @transform_12(%arg0: i32, %arg1: memref<2xi32, #tpu.memory_space<smem>>) -> (i32, i32, i32) {
    %c0_i32 = arith.constant 0 : i32
    %c0_i32_0 = arith.constant 0 : i32
    %c0_i32_1 = arith.constant 0 : i32
    return %arg0, %c0_i32, %c0_i32_0 : i32, i32, i32
  }
}

</mosaic_0001>

<llo_original>
// kernel: tpu_custom_call.1
$region0: #{tpu_custom_call.1}
  #allocation0 [shape = 'u32[]', space=smem, size = 0x4, offset = 0x4, fixed_abs, tag = 'smem constant byte address 0x4 - core index']
  #allocation1 [shape = 'u32[144,128]{1,0:T(1,128)}', space=vmem, size = 0x12000, scoped, tag = 'internal scratch']
  #allocation2 [shape = 's32[1]{0}', space=sflag, size = 0x4, scoped, tag = 'scoped memory for tpu_custom_call.1']
  #allocation3 [shape = 'u8[512]{0}', space=smem, size = 0x200, scoped, tag = 'prefetched SMEM operand 0']
  %s0 = inlined_call_operand.hbm [shape: s32[2], index: 0, kind: input, shape index: {}]
  %s1 = inlined_call_operand.hbm [shape: bf16[2,128,128], index: 1, kind: input, shape index: {}]
  %s2 = inlined_call_operand.hbm [shape: bf16[2,128,128], index: 2, kind: input, shape index: {}]
  %s3 = inlined_call_operand.hbm [shape: bf16[128,128], index: 3, kind: input, shape index: {}]
  %s4 = inlined_call_operand.vmem [shape: f32[1,128], index: 4, kind: input, shape index: {}]
  %s5 = inlined_call_operand.hbm [shape: bf16[128,128], index: 5, kind: input, shape index: {}]
  %s6 = inlined_call_operand.vmem [shape: f32[1,128], index: 6, kind: input, shape index: {}]
  %s7 = inlined_call_operand.hbm [shape: bf16[128,256], index: 7, kind: input, shape index: {}]
  %s8 = inlined_call_operand.vmem [shape: f32[1,256], index: 8, kind: input, shape index: {}]
  %s9 = inlined_call_operand.hbm [shape: bf16[256,512], index: 9, kind: input, shape index: {}]
  %s10 = inlined_call_operand.vmem [shape: f32[1,512], index: 10, kind: input, shape index: {}]
  %s11 = inlined_call_operand.hbm [shape: bf16[512,128], index: 11, kind: input, shape index: {}]
  %s12 = inlined_call_operand.vmem [shape: f32[1,128], index: 12, kind: input, shape index: {}]
  %s13 = inlined_call_operand.hbm [shape: f32[2,1,128], index: 13, kind: output, shape index: {}]
  %s14 = sld [smem:[#allocation0]]
  $region109: #{tpu_custom_call.1} parent=0
    _
  %s16 = ssub.s32 1, %s14
  %s17 = scalar_select 0, %s16, %s14
  %19 = dma.hbm_to_smem %s0, 16, [#allocation3], [#allocation2]
  %20 = dma.done [#allocation2], 16
  %21 = sfence
  $region1: #{tpu_custom_call.1} parent=0
    #allocation4 [shape = 'u8[65536]{0}', space=vmem, size = 0x10000, scoped, tag = 'input window, operand 1']
    #allocation5 [shape = 's32[2]{0}', space=sflag, size = 0x8, scoped, tag = 'scoped memory for tpu_custom_call.1']
    #allocation6 [shape = 's32[2]{0}', space=sflag, size = 0x8, scoped, tag = 'scoped memory for tpu_custom_call.1']
    #allocation7 [shape = 'u8[65536]{0}', space=vmem, size = 0x10000, scoped, tag = 'input window, operand 2']
    #allocation8 [shape = 's32[2]{0}', space=sflag, size = 0x8, scoped, tag = 'scoped memory for tpu_custom_call.1']
    #allocation9 [shape = 'u8[32768]{0}', space=vmem, size = 0x8000, scoped, tag = 'input window, operand 3, single buffered']
    #allocation10 [shape = 'u8[32768]{0}', space=vmem, size = 0x8000, scoped, tag = 'input window, operand 5, single buffered']
    #allocation11 [shape = 's32[1]{0}', space=sflag, size = 0x4, scoped, tag = 'scoped memory for tpu_custom_call.1']
    #allocation12 [shape = 'u8[65536]{0}', space=vmem, size = 0x10000, scoped, tag = 'input window, operand 7, single buffered']
    #allocation13 [shape = 'u8[262144]{0}', space=vmem, size = 0x40000, scoped, tag = 'input window, operand 9, single buffered']
    #allocation14 [shape = 's32[1]{0}', space=sflag, size = 0x4, scoped, tag = 'scoped memory for tpu_custom_call.1']
    #allocation15 [shape = 'u8[131072]{0}', space=vmem, size = 0x20000, scoped, tag = 'input window, operand 11, single buffered']
    #allocation16 [shape = 'u8[1024]{0}', space=vmem, size = 0x400, scoped, tag = 'output window, operand 0']
    %22 = vsyncpa [#allocation5], 0
    %s23 = scalar_lea.sflag [#allocation5], 1
    %24 = vsyncpa %s23, 0
    %25 = vsyncpa [#allocation8], 0
    %s26 = scalar_lea.sflag [#allocation8], 1
    %27 = vsyncpa %s26, 0
    %28 = vsyncpa [#allocation11], 0
    %29 = vsyncpa [#allocation14], 0
    %30 = vsyncpa [#allocation6], 0
    %s31 = scalar_lea.sflag [#allocation6], 1
    %32 = vsyncpa %s31, 0
    loop: start=0, step=1, limit=4
    $region2: #{tpu_custom_call.1} parent=1 // loop_pre_header
      _
    $region3: #{tpu_custom_call.1} parent=1 // loop_header
      %s34 = sphi 0, %s38
      %p35 = scmp.ge.s32.totalorder %s34, 4
      %s44 = sphi 0, %s46
      %s47 = sphi 0, %s44
      %s48 = sphi 0, %s47
      %s64 = sphi 0, %s48
      %s70 = sphi 0, %s72
      %s73 = sphi 0, %s70
      %s74 = sphi 0, %s73
      %s90 = sphi 0, %s74
      %s94 = sphi 0, %s94
      %s96 = sphi 0, %s94
      %s97 = sphi 0, %s96
      %s111 = sphi 0, %s97
      %s115 = sphi 0, %s115
      %s117 = sphi 0, %s115
      %s118 = sphi 0, %s117
      %s132 = sphi 0, %s118
      %s136 = sphi 0, %s136
      %s138 = sphi 0, %s136
      %s139 = sphi 0, %s138
      %s153 = sphi 0, %s139
      %s157 = sphi 0, %s157
      %s159 = sphi 0, %s157
      %s160 = sphi 0, %s159
      %s174 = sphi 0, %s160
      %s178 = sphi 0, %s178
      %s180 = sphi 0, %s178
      %s181 = sphi 0, %s180
      %s195 = sphi 0, %s181
      %s199 = sphi 0, %s199
      %s201 = sphi 0, %s199
      %s202 = sphi 0, %s201
      %s216 = sphi 0, %s202
      %s220 = sphi 0, %s220
      %s222 = sphi 0, %s220
      %s223 = sphi 0, %s222
      %s237 = sphi 0, %s223
      %s241 = sphi 0, %s241
      %s243 = sphi 0, %s241
      %s244 = sphi 0, %s243
      %s258 = sphi 0, %s244
      %s262 = sphi 0, %s262
      %s264 = sphi 0, %s262
      %s265 = sphi 0, %s264
      %s279 = sphi 0, %s265
      %s283 = sphi 0, %s283
      %s285 = sphi 0, %s283
      %s286 = sphi 0, %s285
      %s300 = sphi 0, %s286
      %s306 = sphi 0, %s308
      %s309 = sphi 0, %s306
      %s310 = sphi 0, %s309
      %s326 = sphi 0, %s310
    $region4: #{tpu_custom_call.1} parent=1 // loop_header_branch
      %37 = sbr.rel (%p35) target = $region8
    $region5: #{tpu_custom_call.1} parent=1 // loop_body
      %s39 = ssub.s32 %s34, 1
      %s40 = ssub.s32 %s34, 2
      %s41 = sadd.s32 %s34, 1
      %s42 = ssub.s32 %s34, %s41
      %p43 = scmp.eq.s32.totalorder %s42, 0
      %s45 = sadd.s32 %s44, 1
      %s46 = scalar_select %p43, %s44, %s45
      %p49 = pneg %p43
      %p50 = scmp.eq.s32.totalorder %s34, 1
      %p51 = por %p49, %p50
      %p52 = scmp.ne.s32.totalorder %s44, %s47
      %p53 = scmp.eq.s32.totalorder %s34, 0
      %p54 = por %p52, %p53
      %p55 = scmp.ne.s32.totalorder %s44, %s47
      %p56 = scmp.eq.s32.totalorder %s39, 1
      %p57 = por %p55, %p56
      %p58 = scmp.ne.s32.totalorder %s47, %s48
      %p59 = scmp.eq.s32.totalorder %s39, 0
      %p60 = por %p58, %p59
      %p61 = scmp.ne.s32.totalorder %s47, %s48
      %p62 = scmp.eq.s32.totalorder %s40, 1
      %p63 = por %p61, %p62
      %p65 = scmp.ne.s32.totalorder %s48, %s64
      %p66 = scmp.eq.s32.totalorder %s40, 0
      %p67 = por %p65, %p66
      %s68 = ssub.s32 %s34, %s41
      %p69 = scmp.eq.s32.totalorder %s68, 0
      %s71 = sadd.s32 %s70, 1
      %s72 = scalar_select %p69, %s70, %s71
      %p75 = pneg %p69
      %p76 = scmp.eq.s32.totalorder %s34, 1
      %p77 = por %p75, %p76
      %p78 = scmp.ne.s32.totalorder %s70, %s73
      %p79 = scmp.eq.s32.totalorder %s34, 0
      %p80 = por %p78, %p79
      %p81 = scmp.ne.s32.totalorder %s70, %s73
      %p82 = scmp.eq.s32.totalorder %s39, 1
      %p83 = por %p81, %p82
      %p84 = scmp.ne.s32.totalorder %s73, %s74
      %p85 = scmp.eq.s32.totalorder %s39, 0
      %p86 = por %p84, %p85
      %p87 = scmp.ne.s32.totalorder %s73, %s74
      %p88 = scmp.eq.s32.totalorder %s40, 1
      %p89 = por %p87, %p88
      %p91 = scmp.ne.s32.totalorder %s74, %s90
      %p92 = scmp.eq.s32.totalorder %s40, 0
      %p93 = por %p91, %p92
      %s95 = sadd.s32 %s94, 1
      %p98 = scmp.eq.s32.totalorder %s34, 1
      %p99 = scmp.ne.s32.totalorder %s94, %s96
      %p100 = scmp.eq.s32.totalorder %s34, 0
      %p101 = por %p99, %p100
      %p102 = scmp.ne.s32.totalorder %s94, %s96
      %p103 = scmp.eq.s32.totalorder %s39, 1
      %p104 = por %p102, %p103
      %p105 = scmp.ne.s32.totalorder %s96, %s97
      %p106 = scmp.eq.s32.totalorder %s39, 0
      %p107 = por %p105, %p106
      %p108 = scmp.ne.s32.totalorder %s96, %s97
      %p109 = scmp.eq.s32.totalorder %s40, 1
      %p110 = por %p108, %p109
      %p112 = scmp.ne.s32.totalorder %s97, %s111
      %p113 = scmp.eq.s32.totalorder %s40, 0
      %p114 = por %p112, %p113
      %s116 = sadd.s32 %s115, 1
      %p119 = scmp.eq.s32.totalorder %s34, 1
      %p120 = scmp.ne.s32.totalorder %s115, %s117
      %p121 = scmp.eq.s32.totalorder %s34, 0
      %p122 = por %p120, %p121
      %p123 = scmp.ne.s32.totalorder %s115, %s117
      %p124 = scmp.eq.s32.totalorder %s39, 1
      %p125 = por %p123, %p124
      %p126 = scmp.ne.s32.totalorder %s117, %s118
      %p127 = scmp.eq.s32.totalorder %s39, 0
      %p128 = por %p126, %p127
      %p129 = scmp.ne.s32.totalorder %s117, %s118
      %p130 = scmp.eq.s32.totalorder %s40, 1
      %p131 = por %p129, %p130
      %p133 = scmp.ne.s32.totalorder %s118, %s132
      %p134 = scmp.eq.s32.totalorder %s40, 0
      %p135 = por %p133, %p134
      %s137 = sadd.s32 %s136, 1
      %p140 = scmp.eq.s32.totalorder %s34, 1
      %p141 = scmp.ne.s32.totalorder %s136, %s138
      %p142 = scmp.eq.s32.totalorder %s34, 0
      %p143 = por %p141, %p142
      %p144 = scmp.ne.s32.totalorder %s136, %s138
      %p145 = scmp.eq.s32.totalorder %s39, 1
      %p146 = por %p144, %p145
      %p147 = scmp.ne.s32.totalorder %s138, %s139
      %p148 = scmp.eq.s32.totalorder %s39, 0
      %p149 = por %p147, %p148
      %p150 = scmp.ne.s32.totalorder %s138, %s139
      %p151 = scmp.eq.s32.totalorder %s40, 1
      %p152 = por %p150, %p151
      %p154 = scmp.ne.s32.totalorder %s139, %s153
      %p155 = scmp.eq.s32.totalorder %s40, 0
      %p156 = por %p154, %p155
      %s158 = sadd.s32 %s157, 1
      %p161 = scmp.eq.s32.totalorder %s34, 1
      %p162 = scmp.ne.s32.totalorder %s157, %s159
      %p163 = scmp.eq.s32.totalorder %s34, 0
      %p164 = por %p162, %p163
      %p165 = scmp.ne.s32.totalorder %s157, %s159
      %p166 = scmp.eq.s32.totalorder %s39, 1
      %p167 = por %p165, %p166
      %p168 = scmp.ne.s32.totalorder %s159, %s160
      %p169 = scmp.eq.s32.totalorder %s39, 0
      %p170 = por %p168, %p169
      %p171 = scmp.ne.s32.totalorder %s159, %s160
      %p172 = scmp.eq.s32.totalorder %s40, 1
      %p173 = por %p171, %p172
      %p175 = scmp.ne.s32.totalorder %s160, %s174
      %p176 = scmp.eq.s32.totalorder %s40, 0
      %p177 = por %p175, %p176
      %s179 = sadd.s32 %s178, 1
      %p182 = scmp.eq.s32.totalorder %s34, 1
      %p183 = scmp.ne.s32.totalorder %s178, %s180
      %p184 = scmp.eq.s32.totalorder %s34, 0
      %p185 = por %p183, %p184
      %p186 = scmp.ne.s32.totalorder %s178, %s180
      %p187 = scmp.eq.s32.totalorder %s39, 1
      %p188 = por %p186, %p187
      %p189 = scmp.ne.s32.totalorder %s180, %s181
      %p190 = scmp.eq.s32.totalorder %s39, 0
      %p191 = por %p189, %p190
      %p192 = scmp.ne.s32.totalorder %s180, %s181
      %p193 = scmp.eq.s32.totalorder %s40, 1
      %p194 = por %p192, %p193
      %p196 = scmp.ne.s32.totalorder %s181, %s195
      %p197 = scmp.eq.s32.totalorder %s40, 0
      %p198 = por %p196, %p197
      %s200 = sadd.s32 %s199, 1
      %p203 = scmp.eq.s32.totalorder %s34, 1
      %p204 = scmp.ne.s32.totalorder %s199, %s201
      %p205 = scmp.eq.s32.totalorder %s34, 0
      %p206 = por %p204, %p205
      %p207 = scmp.ne.s32.totalorder %s199, %s201
      %p208 = scmp.eq.s32.totalorder %s39, 1
      %p209 = por %p207, %p208
      %p210 = scmp.ne.s32.totalorder %s201, %s202
      %p211 = scmp.eq.s32.totalorder %s39, 0
      %p212 = por %p210, %p211
      %p213 = scmp.ne.s32.totalorder %s201, %s202
      %p214 = scmp.eq.s32.totalorder %s40, 1
      %p215 = por %p213, %p214
      %p217 = scmp.ne.s32.totalorder %s202, %s216
      %p218 = scmp.eq.s32.totalorder %s40, 0
      %p219 = por %p217, %p218
      %s221 = sadd.s32 %s220, 1
      %p224 = scmp.eq.s32.totalorder %s34, 1
      %p225 = scmp.ne.s32.totalorder %s220, %s222
      %p226 = scmp.eq.s32.totalorder %s34, 0
      %p227 = por %p225, %p226
      %p228 = scmp.ne.s32.totalorder %s220, %s222
      %p229 = scmp.eq.s32.totalorder %s39, 1
      %p230 = por %p228, %p229
      %p231 = scmp.ne.s32.totalorder %s222, %s223
      %p232 = scmp.eq.s32.totalorder %s39, 0
      %p233 = por %p231, %p232
      %p234 = scmp.ne.s32.totalorder %s222, %s223
      %p235 = scmp.eq.s32.totalorder %s40, 1
      %p236 = por %p234, %p235
      %p238 = scmp.ne.s32.totalorder %s223, %s237
      %p239 = scmp.eq.s32.totalorder %s40, 0
      %p240 = por %p238, %p239
      %s242 = sadd.s32 %s241, 1
      %p245 = scmp.eq.s32.totalorder %s34, 1
      %p246 = scmp.ne.s32.totalorder %s241, %s243
      %p247 = scmp.eq.s32.totalorder %s34, 0
      %p248 = por %p246, %p247
      %p249 = scmp.ne.s32.totalorder %s241, %s243
      %p250 = scmp.eq.s32.totalorder %s39, 1
      %p251 = por %p249, %p250
      %p252 = scmp.ne.s32.totalorder %s243, %s244
      %p253 = scmp.eq.s32.totalorder %s39, 0
      %p254 = por %p252, %p253
      %p255 = scmp.ne.s32.totalorder %s243, %s244
      %p256 = scmp.eq.s32.totalorder %s40, 1
      %p257 = por %p255, %p256
      %p259 = scmp.ne.s32.totalorder %s244, %s258
      %p260 = scmp.eq.s32.totalorder %s40, 0
      %p261 = por %p259, %p260
      %s263 = sadd.s32 %s262, 1
      %p266 = scmp.eq.s32.totalorder %s34, 1
      %p267 = scmp.ne.s32.totalorder %s262, %s264
      %p268 = scmp.eq.s32.totalorder %s34, 0
      %p269 = por %p267, %p268
      %p270 = scmp.ne.s32.totalorder %s262, %s264
      %p271 = scmp.eq.s32.totalorder %s39, 1
      %p272 = por %p270, %p271
      %p273 = scmp.ne.s32.totalorder %s264, %s265
      %p274 = scmp.eq.s32.totalorder %s39, 0
      %p275 = por %p273, %p274
      %p276 = scmp.ne.s32.totalorder %s264, %s265
      %p277 = scmp.eq.s32.totalorder %s40, 1
      %p278 = por %p276, %p277
      %p280 = scmp.ne.s32.totalorder %s265, %s279
      %p281 = scmp.eq.s32.totalorder %s40, 0
      %p282 = por %p280, %p281
      %s284 = sadd.s32 %s283, 1
      %p287 = scmp.eq.s32.totalorder %s34, 1
      %p288 = scmp.ne.s32.totalorder %s283, %s285
      %p289 = scmp.eq.s32.totalorder %s34, 0
      %p290 = por %p288, %p289
      %p291 = scmp.ne.s32.totalorder %s283, %s285
      %p292 = scmp.eq.s32.totalorder %s39, 1
      %p293 = por %p291, %p292
      %p294 = scmp.ne.s32.totalorder %s285, %s286
      %p295 = scmp.eq.s32.totalorder %s39, 0
      %p296 = por %p294, %p295
      %p297 = scmp.ne.s32.totalorder %s285, %s286
      %p298 = scmp.eq.s32.totalorder %s40, 1
      %p299 = por %p297, %p298
      %p301 = scmp.ne.s32.totalorder %s286, %s300
      %p302 = scmp.eq.s32.totalorder %s40, 0
      %p303 = por %p301, %p302
      %s304 = ssub.s32 %s34, %s41
      %p305 = scmp.eq.s32.totalorder %s304, 0
      %s307 = sadd.s32 %s306, 1
      %s308 = scalar_select %p305, %s306, %s307
      %p311 = pneg %p305
      %p312 = scmp.eq.s32.totalorder %s34, 1
      %p313 = por %p311, %p312
      %p314 = scmp.ne.s32.totalorder %s306, %s309
      %p315 = scmp.eq.s32.totalorder %s34, 0
      %p316 = por %p314, %p315
      %p317 = scmp.ne.s32.totalorder %s306, %s309
      %p318 = scmp.eq.s32.totalorder %s39, 1
      %p319 = por %p317, %p318
      %p320 = scmp.ne.s32.totalorder %s309, %s310
      %p321 = scmp.eq.s32.totalorder %s39, 0
      %p322 = por %p320, %p321
      %p323 = scmp.ne.s32.totalorder %s309, %s310
      %p324 = scmp.eq.s32.totalorder %s40, 1
      %p325 = por %p323, %p324
      %p327 = scmp.ne.s32.totalorder %s310, %s326
      %p328 = scmp.eq.s32.totalorder %s40, 0
      %p329 = por %p327, %p328
      %p330 = scmp.le.s32.totalorder 1, %s34
      %p331 = scmp.lt.s32.totalorder %s34, 3
      %p332 = pnand %p330, %p331
      %p333 = pneg %p332
      // Predicated region
      $region9: #{tpu_custom_call.1} parent=5 // pred_check
        _
      $region10: #{tpu_custom_call.1} parent=5 // pred_check_branch
        %335 = sbr.rel (%p332) target = $region12
      $region11: #{tpu_custom_call.1} parent=5 // pred_region
        %s336 = ssub.s32 %s34, 1
        // Predicated region
        $region13: #{tpu_custom_call.1} parent=11 // pred_check
          %p337 = pneg %p107
        $region14: #{tpu_custom_call.1} parent=11 // pred_check_branch
          %339 = sbr.rel (%p337) target = $region16
        $region15: #{tpu_custom_call.1} parent=11 // pred_region
          %s341 = ssub.s32 1024, 1024
          %342 = vsyncadd [#allocation8], %s341
          %s343 = sshll.u32 [#allocation9], 4
          %s344 = int_to_ptr.vmem [resolvable:$true] %s343
          %349 = dma.hbm_to_vmem [thread:$0]  %s3, 1024, %s344, [#allocation8], 64, 64, 4
        $region16: #{tpu_custom_call.1} parent=11 // pred_fallthru
          _
        // Predicated region
        $region17: #{tpu_custom_call.1} parent=11 // pred_check
          %p350 = pneg %p128
        $region18: #{tpu_custom_call.1} parent=11 // pred_check_branch
          %352 = sbr.rel (%p350) target = $region20
        $region19: #{tpu_custom_call.1} parent=11 // pred_region
          _
        $region20: #{tpu_custom_call.1} parent=11 // pred_fallthru
          _
        // Predicated region
        $region21: #{tpu_custom_call.1} parent=11 // pred_check
          %p353 = pneg %p149
        $region22: #{tpu_custom_call.1} parent=11 // pred_check_branch
          %355 = sbr.rel (%p353) target = $region24
        $region23: #{tpu_custom_call.1} parent=11 // pred_region
          %s357 = ssub.s32 1024, 1024
          %358 = vsyncadd [#allocation11], %s357
          %s359 = sshll.u32 [#allocation10], 4
          %s360 = int_to_ptr.vmem [resolvable:$true] %s359
          %365 = dma.hbm_to_vmem [thread:$0]  %s5, 1024, %s360, [#allocation11], 64, 64, 4
        $region24: #{tpu_custom_call.1} parent=11 // pred_fallthru
          _
        // Predicated region
        $region25: #{tpu_custom_call.1} parent=11 // pred_check
          %p366 = pneg %p170
        $region26: #{tpu_custom_call.1} parent=11 // pred_check_branch
          %368 = sbr.rel (%p366) target = $region28
        $region27: #{tpu_custom_call.1} parent=11 // pred_region
          _
        $region28: #{tpu_custom_call.1} parent=11 // pred_fallthru
          _
        // Predicated region
        $region29: #{tpu_custom_call.1} parent=11 // pred_check
          %p369 = pneg %p191
        $region30: #{tpu_custom_call.1} parent=11 // pred_check_branch
          %371 = sbr.rel (%p369) target = $region32
        $region31: #{tpu_custom_call.1} parent=11 // pred_region
          %s373 = ssub.s32 2048, 2048
          %374 = vsyncadd [#allocation11], %s373
          %s375 = sshll.u32 [#allocation12], 4
          %s376 = int_to_ptr.vmem [resolvable:$true] %s375
          %381 = dma.hbm_to_vmem [thread:$0]  %s7, 2048, %s376, [#allocation11], 128, 128, 8
        $region32: #{tpu_custom_call.1} parent=11 // pred_fallthru
          _
        // Predicated region
        $region33: #{tpu_custom_call.1} parent=11 // pred_check
          %p382 = pneg %p212
        $region34: #{tpu_custom_call.1} parent=11 // pred_check_branch
          %384 = sbr.rel (%p382) target = $region36
        $region35: #{tpu_custom_call.1} parent=11 // pred_region
          _
        $region36: #{tpu_custom_call.1} parent=11 // pred_fallthru
          _
        // Predicated region
        $region37: #{tpu_custom_call.1} parent=11 // pred_check
          %p385 = pneg %p233
        $region38: #{tpu_custom_call.1} parent=11 // pred_check_branch
          %387 = sbr.rel (%p385) target = $region40
        $region39: #{tpu_custom_call.1} parent=11 // pred_region
          %s389 = ssub.s32 8192, 8192
          %390 = vsyncadd [#allocation14], %s389
          %s391 = sshll.u32 [#allocation13], 4
          %s392 = int_to_ptr.vmem [resolvable:$true] %s391
          %397 = dma.hbm_to_vmem [thread:$0]  %s9, 8192, %s392, [#allocation14], 256, 256, 16
        $region40: #{tpu_custom_call.1} parent=11 // pred_fallthru
          _
        // Predicated region
        $region41: #{tpu_custom_call.1} parent=11 // pred_check
          %p398 = pneg %p254
        $region42: #{tpu_custom_call.1} parent=11 // pred_check_branch
          %400 = sbr.rel (%p398) target = $region44
        $region43: #{tpu_custom_call.1} parent=11 // pred_region
          _
        $region44: #{tpu_custom_call.1} parent=11 // pred_fallthru
          _
        // Predicated region
        $region45: #{tpu_custom_call.1} parent=11 // pred_check
          %p401 = pneg %p275
        $region46: #{tpu_custom_call.1} parent=11 // pred_check_branch
          %403 = sbr.rel (%p401) target = $region48
        $region47: #{tpu_custom_call.1} parent=11 // pred_region
          %s405 = ssub.s32 4096, 4096
          %406 = vsyncadd [#allocation14], %s405
          %s407 = sshll.u32 [#allocation15], 4
          %s408 = int_to_ptr.vmem [resolvable:$true] %s407
          %413 = dma.hbm_to_vmem [thread:$0]  %s11, 4096, %s408, [#allocation14], 64, 64, 4
        $region48: #{tpu_custom_call.1} parent=11 // pred_fallthru
          _
        // Predicated region
        $region49: #{tpu_custom_call.1} parent=11 // pred_check
          %p414 = pneg %p296
        $region50: #{tpu_custom_call.1} parent=11 // pred_check_branch
          %416 = sbr.rel (%p414) target = $region52
        $region51: #{tpu_custom_call.1} parent=11 // pred_region
          _
        $region52: #{tpu_custom_call.1} parent=11 // pred_fallthru
          _
      $region12: #{tpu_custom_call.1} parent=5 // pred_fallthru
        _
      %p417 = scmp.lt.s32.totalorder %s34, 2
      // Predicated region
      $region53: #{tpu_custom_call.1} parent=5 // pred_check
        %p418 = pneg %p417
      $region54: #{tpu_custom_call.1} parent=5 // pred_check_branch
        %420 = sbr.rel (%p418) target = $region56
      $region55: #{tpu_custom_call.1} parent=5 // pred_region
        // Predicated region
        $region57: #{tpu_custom_call.1} parent=55 // pred_check
          %p421 = pneg %p54
        $region58: #{tpu_custom_call.1} parent=55 // pred_check_branch
          %423 = sbr.rel (%p421) target = $region60
        $region59: #{tpu_custom_call.1} parent=55 // pred_region
          %s424 = sand.u32 %s44, 1
          %s425 = scalar_lea.sflag [#allocation5], %s424
          %s426 = sand.u32 %s44, 1
          %s427 = smul.addr %s426, 64
          %s428 = scalar_lea.vmem [#allocation4], %s427
          %s430 = ssub.s32 1024, 1024
          %431 = vsyncadd %s425, %s430
          %s432 = smul.addr %s34, 16
          %s433 = smul.addr %s432, 64
          %s434 = scalar_lea.hbm %s1, %s433
          %s435 = sshll.u32 %s428, 4
          %s436 = int_to_ptr.vmem [resolvable:$true] %s435
          %441 = dma.hbm_to_vmem [thread:$0]  %s434, 1024, %s436, %s425, 64, 64, 4
        $region60: #{tpu_custom_call.1} parent=55 // pred_fallthru
          _
        // Predicated region
        $region61: #{tpu_custom_call.1} parent=55 // pred_check
          %p442 = pneg %p80
        $region62: #{tpu_custom_call.1} parent=55 // pred_check_branch
          %444 = sbr.rel (%p442) target = $region64
        $region63: #{tpu_custom_call.1} parent=55 // pred_region
          %s445 = sand.u32 %s34, 1
          %s446 = scalar_lea.sflag [#allocation8], %s445
          %s447 = sand.u32 %s70, 1
          %s448 = smul.addr %s447, 64
          %s449 = scalar_lea.vmem [#allocation7], %s448
          %s451 = ssub.s32 1024, 1024
          %452 = vsyncadd %s446, %s451
          %s453 = smul.addr %s34, 16
          %s454 = smul.addr %s453, 64
          %s455 = scalar_lea.hbm %s2, %s454
          %s456 = sshll.u32 %s449, 4
          %s457 = int_to_ptr.vmem [resolvable:$true] %s456
          %462 = dma.hbm_to_vmem [thread:$0]  %s455, 1024, %s457, %s446, 64, 64, 4
        $region64: #{tpu_custom_call.1} parent=55 // pred_fallthru
          _
      $region56: #{tpu_custom_call.1} parent=5 // pred_fallthru
        _
      %p463 = scmp.le.s32.totalorder 1, %s34
      %p464 = scmp.lt.s32.totalorder %s34, 3
      %p465 = pnand %p463, %p464
      %p466 = pneg %p465
      // Predicated region
      $region65: #{tpu_custom_call.1} parent=5 // pred_check
        _
      $region66: #{tpu_custom_call.1} parent=5 // pred_check_branch
        %468 = sbr.rel (%p465) target = $region68
      $region67: #{tpu_custom_call.1} parent=5 // pred_region
        %s469 = ssub.s32 %s34, 1
        %s470 = sand.u32 %s47, 1
        %s471 = scalar_lea.sflag [#allocation5], %s470
        %s472 = sand.u32 %s47, 1
        %s473 = smul.addr %s472, 64
        %s474 = scalar_lea.vmem [#allocation4], %s473
        // Predicated region
        $region69: #{tpu_custom_call.1} parent=67 // pred_check
          %p475 = pneg %p60
        $region70: #{tpu_custom_call.1} parent=67 // pred_check_branch
          %477 = sbr.rel (%p475) target = $region72
        $region71: #{tpu_custom_call.1} parent=67 // pred_region
          %478 = dma.done %s471, 1024
        $region72: #{tpu_custom_call.1} parent=67 // pred_fallthru
          _
        %s479 = sand.u32 %s39, 1
        %s480 = scalar_lea.sflag [#allocation8], %s479
        %s481 = sand.u32 %s73, 1
        %s482 = smul.addr %s481, 64
        %s483 = scalar_lea.vmem [#allocation7], %s482
        // Predicated region
        $region73: #{tpu_custom_call.1} parent=67 // pred_check
          %p484 = pneg %p86
        $region74: #{tpu_custom_call.1} parent=67 // pred_check_branch
          %486 = sbr.rel (%p484) target = $region76
        $region75: #{tpu_custom_call.1} parent=67 // pred_region
          %487 = dma.done %s480, 1024
        $region76: #{tpu_custom_call.1} parent=67 // pred_fallthru
          _
        // Predicated region
        $region77: #{tpu_custom_call.1} parent=67 // pred_check
          %p488 = pneg %p107
        $region78: #{tpu_custom_call.1} parent=67 // pred_check_branch
          %490 = sbr.rel (%p488) target = $region80
        $region79: #{tpu_custom_call.1} parent=67 // pred_region
          %491 = dma.done [#allocation8], 1024
        $region80: #{tpu_custom_call.1} parent=67 // pred_fallthru
          _
        // Predicated region
        $region81: #{tpu_custom_call.1} parent=67 // pred_check
          %p492 = pneg %p149
        $region82: #{tpu_custom_call.1} parent=67 // pred_check_branch
          %494 = sbr.rel (%p492) target = $region84
        $region83: #{tpu_custom_call.1} parent=67 // pred_region
          %495 = dma.done [#allocation11], 1024
        $region84: #{tpu_custom_call.1} parent=67 // pred_fallthru
          _
        // Predicated region
        $region85: #{tpu_custom_call.1} parent=67 // pred_check
          %p496 = pneg %p191
        $region86: #{tpu_custom_call.1} parent=67 // pred_check_branch
          %498 = sbr.rel (%p496) target = $region88
        $region87: #{tpu_custom_call.1} parent=67 // pred_region
          %499 = dma.done [#allocation11], 2048
        $region88: #{tpu_custom_call.1} parent=67 // pred_fallthru
          _
        // Predicated region
        $region89: #{tpu_custom_call.1} parent=67 // pred_check
          %p500 = pneg %p233
        $region90: #{tpu_custom_call.1} parent=67 // pred_check_branch
          %502 = sbr.rel (%p500) target = $region92
        $region91: #{tpu_custom_call.1} parent=67 // pred_region
          %503 = dma.done [#allocation14], 8192
        $region92: #{tpu_custom_call.1} parent=67 // pred_fallthru
          _
        // Predicated region
        $region93: #{tpu_custom_call.1} parent=67 // pred_check
          %p504 = pneg %p275
        $region94: #{tpu_custom_call.1} parent=67 // pred_check_branch
          %506 = sbr.rel (%p504) target = $region96
        $region95: #{tpu_custom_call.1} parent=67 // pred_region
          %507 = dma.done [#allocation14], 4096
        $region96: #{tpu_custom_call.1} parent=67 // pred_fallthru
          _
        %s508 = sand.u32 %s47, 1
        %s509 = scalar_lea.sflag [#allocation5], %s508
        %s510 = sand.u32 %s47, 1
        %s511 = smul.addr %s510, 64
        %s512 = scalar_lea.vmem [#allocation4], %s511
        %p513 = pneg %p60
        %p514 = pneg %p57
        %s515 = sand.u32 %s39, 1
        %s516 = scalar_lea.sflag [#allocation8], %s515
        %s517 = sand.u32 %s73, 1
        %s518 = smul.addr %s517, 64
        %s519 = scalar_lea.vmem [#allocation7], %s518
        %p520 = pneg %p86
        %p521 = pneg %p83
        %p522 = pneg %p107
        %p523 = pneg %p104
        %p524 = pneg %p128
        %p525 = pneg %p125
        %p526 = pneg %p149
        %p527 = pneg %p146
        %p528 = pneg %p170
        %p529 = pneg %p167
        %p530 = pneg %p191
        %p531 = pneg %p188
        %p532 = pneg %p212
        %p533 = pneg %p209
        %p534 = pneg %p233
        %p535 = pneg %p230
        %p536 = pneg %p254
        %p537 = pneg %p251
        %p538 = pneg %p275
        %p539 = pneg %p272
        %p540 = pneg %p296
        %p541 = pneg %p293
        %p542 = pneg %p322
        %p543 = pneg %p319
        %s544 = sand.u32 %s309, 1
        %s545 = scalar_lea.sflag [#allocation6], %s544
        %s546 = sand.u32 %s309, 1
        %s547 = scalar_lea.vmem [#allocation16], %s546
        %s551 = sld [smem:[#allocation3 + %s39]]
        %v552 = vld [vmem:[%s474] sm:$0xf]
        %v553 = vld [vmem:[%s474 + $0x4] sm:$0xf]
        %v554 = vld [vmem:[%s474 + $0x8] sm:$0xf]
        %v555 = vld [vmem:[%s474 + $0xc] sm:$0xf]
        %v556 = vld [vmem:[%s474 + $0x10] sm:$0xf]
        %v557 = vld [vmem:[%s474 + $0x14] sm:$0xf]
        %v558 = vld [vmem:[%s474 + $0x18] sm:$0xf]
        %v559 = vld [vmem:[%s474 + $0x1c] sm:$0xf]
        %v560 = vld [vmem:[%s474 + $0x20] sm:$0xf]
        %v561 = vld [vmem:[%s474 + $0x24] sm:$0xf]
        %v562 = vld [vmem:[%s474 + $0x28] sm:$0xf]
        %v563 = vld [vmem:[%s474 + $0x2c] sm:$0xf]
        %v564 = vld [vmem:[%s474 + $0x30] sm:$0xf]
        %v565 = vld [vmem:[%s474 + $0x34] sm:$0xf]
        %v566 = vld [vmem:[%s474 + $0x38] sm:$0xf]
        %v567 = vld [vmem:[%s474 + $0x3c] sm:$0xf]
        %v568 = vld [vmem:[%s483] sm:$0xf]
        %v569 = vld [vmem:[%s483 + $0x4] sm:$0xf]
        %v570 = vld [vmem:[%s483 + $0x8] sm:$0xf]
        %v571 = vld [vmem:[%s483 + $0xc] sm:$0xf]
        %v572 = vld [vmem:[%s483 + $0x10] sm:$0xf]
        %v573 = vld [vmem:[%s483 + $0x14] sm:$0xf]
        %v574 = vld [vmem:[%s483 + $0x18] sm:$0xf]
        %v575 = vld [vmem:[%s483 + $0x1c] sm:$0xf]
        %v576 = vld [vmem:[%s483 + $0x20] sm:$0xf]
        %v577 = vld [vmem:[%s483 + $0x24] sm:$0xf]
        %v578 = vld [vmem:[%s483 + $0x28] sm:$0xf]
        %v579 = vld [vmem:[%s483 + $0x2c] sm:$0xf]
        %v580 = vld [vmem:[%s483 + $0x30] sm:$0xf]
        %v581 = vld [vmem:[%s483 + $0x34] sm:$0xf]
        %v582 = vld [vmem:[%s483 + $0x38] sm:$0xf]
        %v583 = vld [vmem:[%s483 + $0x3c] sm:$0xf]
        %v600 = vunpack.c.l.b16 %v552
        %v601 = vunpack.c.l.b16 %v553
        %v602 = vunpack.c.l.b16 %v554
        %v603 = vunpack.c.l.b16 %v555
        %v604 = vunpack.c.l.b16 %v556
        %v605 = vunpack.c.l.b16 %v557
        %v606 = vunpack.c.l.b16 %v558
        %v607 = vunpack.c.l.b16 %v559
        %v608 = vunpack.c.l.b16 %v560
        %v609 = vunpack.c.l.b16 %v561
        %v610 = vunpack.c.l.b16 %v562
        %v611 = vunpack.c.l.b16 %v563
        %v612 = vunpack.c.l.b16 %v564
        %v613 = vunpack.c.l.b16 %v565
        %v614 = vunpack.c.l.b16 %v566
        %v615 = vunpack.c.l.b16 %v567
        %v616 = vpack.c.b16 %v601, %v600
        %v617 = vpack.c.b16 %v603, %v602
        %v618 = vpack.c.b16 %v605, %v604
        %v619 = vpack.c.b16 %v607, %v606
        %v620 = vpack.c.b16 %v609, %v608
        %v621 = vpack.c.b16 %v611, %v610
        %v622 = vpack.c.b16 %v613, %v612
        %v623 = vpack.c.b16 %v615, %v614
        %v648 = vunpack.c.l.b16 %v568
        %v649 = vunpack.c.l.b16 %v569
        %v650 = vunpack.c.l.b16 %v570
        %v651 = vunpack.c.l.b16 %v571
        %v652 = vunpack.c.l.b16 %v572
        %v653 = vunpack.c.l.b16 %v573
        %v654 = vunpack.c.l.b16 %v574
        %v655 = vunpack.c.l.b16 %v575
        %v656 = vunpack.c.l.b16 %v576
        %v657 = vunpack.c.l.b16 %v577
        %v658 = vunpack.c.l.b16 %v578
        %v659 = vunpack.c.l.b16 %v579
        %v660 = vunpack.c.l.b16 %v580
        %v661 = vunpack.c.l.b16 %v581
        %v662 = vunpack.c.l.b16 %v582
        %v663 = vunpack.c.l.b16 %v583
        %v664 = vpack.c.b16 %v649, %v648
        %v665 = vpack.c.b16 %v651, %v650
        %v666 = vpack.c.b16 %v653, %v652
        %v667 = vpack.c.b16 %v655, %v654
        %v668 = vpack.c.b16 %v657, %v656
        %v669 = vpack.c.b16 %v659, %v658
        %v670 = vpack.c.b16 %v661, %v660
        %v671 = vpack.c.b16 %v663, %v662
        %680 = vmatprep.subr.bf16.mxu0 0
        %681 = vmatpush1.bf16.msra.mxu0 %v664
        %682 = vmatprep.subr.bf16.mxu0 0
        %683 = vmatpush1.bf16.msra.mxu0 %v665
        %684 = vmatprep.subr.bf16.mxu0 0
        %685 = vmatpush1.bf16.msra.mxu0 %v666
        %686 = vmatprep.subr.bf16.mxu0 0
        %687 = vmatpush1.bf16.msra.mxu0 %v667
        %688 = vmatprep.subr.bf16.mxu0 0
        %689 = vmatpush1.bf16.msra.mxu0 %v668
        %690 = vmatprep.subr.bf16.mxu0 0
        %691 = vmatpush1.bf16.msra.mxu0 %v669
        %692 = vmatprep.subr.bf16.mxu0 0
        %693 = vmatpush1.bf16.msra.mxu0 %v670
        %694 = vmatprep.subr.bf16.mxu0 0
        %695 = vmatpush1.bf16.msra.mxu0 %v671
        %696 = vmatprep.subr.bf16.mxu0 0
        %697 = vmatpush1.bf16.msra.mxu0 0
        %698 = vmatprep.subr.bf16.mxu0 0
        %699 = vmatpush1.bf16.msra.mxu0 0
        %700 = vmatprep.subr.bf16.mxu0 0
        %701 = vmatpush1.bf16.msra.mxu0 0
        %702 = vmatprep.subr.bf16.mxu0 0
        %703 = vmatpush1.bf16.msra.mxu0 0
        %704 = vmatprep.subr.bf16.mxu0 0
        %705 = vmatpush1.bf16.msra.mxu0 0
        %706 = vmatprep.subr.bf16.mxu0 0
        %707 = vmatpush1.bf16.msra.mxu0 0
        %708 = vmatprep.subr.bf16.mxu0 0
        %709 = vmatpush1.bf16.msra.mxu0 0
        %710 = vmatprep.subr.bf16.mxu0 0
        %711 = vmatpush1.bf16.msra.mxu0 0
        %712 = vmatprep.mubr.bf16.mxu0 0
        %713 = vmatmul.mubr.bf16.gmra.mrb[0].mxu0 %v616
        %v714 = vpop.f32.mrb[0].mxu0
        %v715 = vadd.f32 0.0, %v714
        %v716 = vpop.f32.mrb[0].mxu0
        %v717 = vpop.f32.mrb[0].mxu0
        %v718 = vadd.f32 0.0, %v717
        %v719 = vpop.f32.mrb[0].mxu0
        %720 = vmatprep.mubr.bf16.mxu0 0
        %721 = vmatmul.mubr.bf16.gmra.mrb[0].mxu0 %v617
        %v722 = vpop.f32.mrb[0].mxu0
        %v723 = vadd.f32 0.0, %v722
        %v724 = vpop.f32.mrb[0].mxu0
        %v725 = vpop.f32.mrb[0].mxu0
        %v726 = vadd.f32 0.0, %v725
        %v727 = vpop.f32.mrb[0].mxu0
        %728 = vmatprep.mubr.bf16.mxu0 0
        %729 = vmatmul.mubr.bf16.gmra.mrb[0].mxu0 %v618
        %v730 = vpop.f32.mrb[0].mxu0
        %v731 = vadd.f32 0.0, %v730
        %v732 = vpop.f32.mrb[0].mxu0
        %v733 = vpop.f32.mrb[0].mxu0
        %v734 = vadd.f32 0.0, %v733
        %v735 = vpop.f32.mrb[0].mxu0
        %736 = vmatprep.mubr.bf16.mxu0 0
        %737 = vmatmul.mubr.bf16.gmra.mrb[0].mxu0 %v619
        %v738 = vpop.f32.mrb[0].mxu0
        %v739 = vadd.f32 0.0, %v738
        %v740 = vpop.f32.mrb[0].mxu0
        %v741 = vpop.f32.mrb[0].mxu0
        %v742 = vadd.f32 0.0, %v741
        %v743 = vpop.f32.mrb[0].mxu0
        %744 = vmatprep.mubr.bf16.mxu0 0
        %745 = vmatmul.mubr.bf16.gmra.mrb[0].mxu0 %v620
        %v746 = vpop.f32.mrb[0].mxu0
        %v747 = vadd.f32 0.0, %v746
        %v748 = vpop.f32.mrb[0].mxu0
        %v749 = vpop.f32.mrb[0].mxu0
        %v750 = vadd.f32 0.0, %v749
        %v751 = vpop.f32.mrb[0].mxu0
        %752 = vmatprep.mubr.bf16.mxu0 0
        %753 = vmatmul.mubr.bf16.gmra.mrb[0].mxu0 %v621
        %v754 = vpop.f32.mrb[0].mxu0
        %v755 = vadd.f32 0.0, %v754
        %v756 = vpop.f32.mrb[0].mxu0
        %v757 = vpop.f32.mrb[0].mxu0
        %v758 = vadd.f32 0.0, %v757
        %v759 = vpop.f32.mrb[0].mxu0
        %760 = vmatprep.mubr.bf16.mxu0 0
        %761 = vmatmul.mubr.bf16.gmra.mrb[0].mxu0 %v622
        %v762 = vpop.f32.mrb[0].mxu0
        %v763 = vadd.f32 0.0, %v762
        %v764 = vpop.f32.mrb[0].mxu0
        %v765 = vpop.f32.mrb[0].mxu0
        %v766 = vadd.f32 0.0, %v765
        %v767 = vpop.f32.mrb[0].mxu0
        %768 = vmatprep.mubr.bf16.mxu0 0
        %769 = vmatmul.mubr.bf16.gmra.mrb[0].mxu0 %v623
        %v770 = vpop.f32.mrb[0].mxu0
        %v771 = vadd.f32 0.0, %v770
        %v772 = vpop.f32.mrb[0].mxu0
        %v773 = vpop.f32.mrb[0].mxu0
        %v774 = vadd.f32 0.0, %v773
        %v775 = vpop.f32.mrb[0].mxu0
        %776 = vdwg.mxu0
        %v777 = vpack.c.bf16 %v718, %v715
        %v778 = vpack.c.bf16 %v726, %v723
        %v779 = vpack.c.bf16 %v734, %v731
        %v780 = vpack.c.bf16 %v742, %v739
        %v781 = vpack.c.bf16 %v750, %v747
        %v782 = vpack.c.bf16 %v758, %v755
        %v783 = vpack.c.bf16 %v766, %v763
        %v784 = vpack.c.bf16 %v774, %v771
        %v785 = vld [vmem:[#allocation9] sm:$0xf]
        %v786 = vld [vmem:[#allocation9 + $0x4] sm:$0xf]
        %v787 = vld [vmem:[#allocation9 + $0x8] sm:$0xf]
        %v788 = vld [vmem:[#allocation9 + $0xc] sm:$0xf]
        %v789 = vld [vmem:[#allocation9 + $0x10] sm:$0xf]
        %v790 = vld [vmem:[#allocation9 + $0x14] sm:$0xf]
        %v791 = vld [vmem:[#allocation9 + $0x18] sm:$0xf]
        %v792 = vld [vmem:[#allocation9 + $0x1c] sm:$0xf]
        %v793 = vld [vmem:[#allocation9 + $0x20] sm:$0xf]
        %v794 = vld [vmem:[#allocation9 + $0x24] sm:$0xf]
        %v795 = vld [vmem:[#allocation9 + $0x28] sm:$0xf]
        %v796 = vld [vmem:[#allocation9 + $0x2c] sm:$0xf]
        %v797 = vld [vmem:[#allocation9 + $0x30] sm:$0xf]
        %v798 = vld [vmem:[#allocation9 + $0x34] sm:$0xf]
        %v799 = vld [vmem:[#allocation9 + $0x38] sm:$0xf]
        %v800 = vld [vmem:[#allocation9 + $0x3c] sm:$0xf]
        %v801 = vld [vmem:[%s4] sm:$0x1]
        %v803 = vlaneseq
        %v804 = vshrl.u32 %v803, 7
        %v805 = vsub.s32 0, %v804
        %v806 = vrot.slane %v801, %v805
        %v824 = vunpack.c.l.b16 %v785
        %v825 = vunpack.c.l.b16 %v786
        %v826 = vunpack.c.l.b16 %v787
        %v827 = vunpack.c.l.b16 %v788
        %v828 = vunpack.c.l.b16 %v789
        %v829 = vunpack.c.l.b16 %v790
        %v830 = vunpack.c.l.b16 %v791
        %v831 = vunpack.c.l.b16 %v792
        %v832 = vunpack.c.l.b16 %v793
        %v833 = vunpack.c.l.b16 %v794
        %v834 = vunpack.c.l.b16 %v795
        %v835 = vunpack.c.l.b16 %v796
        %v836 = vunpack.c.l.b16 %v797
        %v837 = vunpack.c.l.b16 %v798
        %v838 = vunpack.c.l.b16 %v799
        %v839 = vunpack.c.l.b16 %v800
        %v840 = vpack.c.b16 %v825, %v824
        %v841 = vpack.c.b16 %v827, %v826
        %v842 = vpack.c.b16 %v829, %v828
        %v843 = vpack.c.b16 %v831, %v830
        %v844 = vpack.c.b16 %v833, %v832
        %v845 = vpack.c.b16 %v835, %v834
        %v846 = vpack.c.b16 %v837, %v836
        %v847 = vpack.c.b16 %v839, %v838
        %856 = vmatprep.subr.bf16.mxu0 0
        %857 = vmatpush1.bf16.msra.mxu0 %v840
        %858 = vmatprep.subr.bf16.mxu0 0
        %859 = vmatpush1.bf16.msra.mxu0 %v841
        %860 = vmatprep.subr.bf16.mxu0 0
        %861 = vmatpush1.bf16.msra.mxu0 %v842
        %862 = vmatprep.subr.bf16.mxu0 0
        %863 = vmatpush1.bf16.msra.mxu0 %v843
        %864 = vmatprep.subr.bf16.mxu0 0
        %865 = vmatpush1.bf16.msra.mxu0 %v844
        %866 = vmatprep.subr.bf16.mxu0 0
        %867 = vmatpush1.bf16.msra.mxu0 %v845
        %868 = vmatprep.subr.bf16.mxu0 0
        %869 = vmatpush1.bf16.msra.mxu0 %v846
        %870 = vmatprep.subr.bf16.mxu0 0
        %871 = vmatpush1.bf16.msra.mxu0 %v847
        %872 = vmatprep.subr.bf16.mxu0 0
        %873 = vmatpush1.bf16.msra.mxu0 0
        %874 = vmatprep.subr.bf16.mxu0 0
        %875 = vmatpush1.bf16.msra.mxu0 0
        %876 = vmatprep.subr.bf16.mxu0 0
        %877 = vmatpush1.bf16.msra.mxu0 0
        %878 = vmatprep.subr.bf16.mxu0 0
        %879 = vmatpush1.bf16.msra.mxu0 0
        %880 = vmatprep.subr.bf16.mxu0 0
        %881 = vmatpush1.bf16.msra.mxu0 0
        %882 = vmatprep.subr.bf16.mxu0 0
        %883 = vmatpush1.bf16.msra.mxu0 0
        %884 = vmatprep.subr.bf16.mxu0 0
        %885 = vmatpush1.bf16.msra.mxu0 0
        %886 = vmatprep.subr.bf16.mxu0 0
        %887 = vmatpush1.bf16.msra.mxu0 0
        %888 = vmatprep.mubr.bf16.mxu0 0
        %889 = vmatmul.mubr.bf16.gmra.mrb[0].mxu0 %v777
        %v890 = vpop.f32.mrb[0].mxu0
        %v891 = vadd.f32 %v806, %v890
        %v892 = vpop.f32.mrb[0].mxu0
        %v893 = vpop.f32.mrb[0].mxu0
        %v894 = vadd.f32 %v806, %v893
        %v895 = vpop.f32.mrb[0].mxu0
        %896 = vmatprep.mubr.bf16.mxu0 0
        %897 = vmatmul.mubr.bf16.gmra.mrb[0].mxu0 %v778
        %v898 = vpop.f32.mrb[0].mxu0
        %v899 = vadd.f32 %v806, %v898
        %v900 = vpop.f32.mrb[0].mxu0
        %v901 = vpop.f32.mrb[0].mxu0
        %v902 = vadd.f32 %v806, %v901
        %v903 = vpop.f32.mrb[0].mxu0
        %904 = vmatprep.mubr.bf16.mxu0 0
        %905 = vmatmul.mubr.bf16.gmra.mrb[0].mxu0 %v779
        %v906 = vpop.f32.mrb[0].mxu0
        %v907 = vadd.f32 %v806, %v906
        %v908 = vpop.f32.mrb[0].mxu0
        %v909 = vpop.f32.mrb[0].mxu0
        %v910 = vadd.f32 %v806, %v909
        %v911 = vpop.f32.mrb[0].mxu0
        %912 = vmatprep.mubr.bf16.mxu0 0
        %913 = vmatmul.mubr.bf16.gmra.mrb[0].mxu0 %v780
        %v914 = vpop.f32.mrb[0].mxu0
        %v915 = vadd.f32 %v806, %v914
        %v916 = vpop.f32.mrb[0].mxu0
        %v917 = vpop.f32.mrb[0].mxu0
        %v918 = vadd.f32 %v806, %v917
        %v919 = vpop.f32.mrb[0].mxu0
        %920 = vmatprep.mubr.bf16.mxu0 0
        %921 = vmatmul.mubr.bf16.gmra.mrb[0].mxu0 %v781
        %v922 = vpop.f32.mrb[0].mxu0
        %v923 = vadd.f32 %v806, %v922
        %v924 = vpop.f32.mrb[0].mxu0
        %v925 = vpop.f32.mrb[0].mxu0
        %v926 = vadd.f32 %v806, %v925
        %v927 = vpop.f32.mrb[0].mxu0
        %928 = vmatprep.mubr.bf16.mxu0 0
        %929 = vmatmul.mubr.bf16.gmra.mrb[0].mxu0 %v782
        %v930 = vpop.f32.mrb[0].mxu0
        %v931 = vadd.f32 %v806, %v930
        %v932 = vpop.f32.mrb[0].mxu0
        %v933 = vpop.f32.mrb[0].mxu0
        %v934 = vadd.f32 %v806, %v933
        %v935 = vpop.f32.mrb[0].mxu0
        %936 = vmatprep.mubr.bf16.mxu0 0
        %937 = vmatmul.mubr.bf16.gmra.mrb[0].mxu0 %v783
        %v938 = vpop.f32.mrb[0].mxu0
        %v939 = vadd.f32 %v806, %v938
        %v940 = vpop.f32.mrb[0].mxu0
        %v941 = vpop.f32.mrb[0].mxu0
        %v942 = vadd.f32 %v806, %v941
        %v943 = vpop.f32.mrb[0].mxu0
        %944 = vmatprep.mubr.bf16.mxu0 0
        %945 = vmatmul.mubr.bf16.gmra.mrb[0].mxu0 %v784
        %v946 = vpop.f32.mrb[0].mxu0
        %v947 = vadd.f32 %v806, %v946
        %v948 = vpop.f32.mrb[0].mxu0
        %v949 = vpop.f32.mrb[0].mxu0
        %v950 = vadd.f32 %v806, %v949
        %v951 = vpop.f32.mrb[0].mxu0
        %952 = vdwg.mxu0
        %v953 = vmax.f32 %v891, 0.0
        %v954 = vmax.f32 %v894, 0.0
        %v955 = vmax.f32 %v899, 0.0
        %v956 = vmax.f32 %v902, 0.0
        %v957 = vmax.f32 %v907, 0.0
        %v958 = vmax.f32 %v910, 0.0
        %v959 = vmax.f32 %v915, 0.0
        %v960 = vmax.f32 %v918, 0.0
        %v961 = vmax.f32 %v923, 0.0
        %v962 = vmax.f32 %v926, 0.0
        %v963 = vmax.f32 %v931, 0.0
        %v964 = vmax.f32 %v934, 0.0
        %v965 = vmax.f32 %v939, 0.0
        %v966 = vmax.f32 %v942, 0.0
        %v967 = vmax.f32 %v947, 0.0
        %v968 = vmax.f32 %v950, 0.0
        %v969 = vpack.c.bf16 %v954, %v953
        %v970 = vpack.c.bf16 %v956, %v955
        %v971 = vpack.c.bf16 %v958, %v957
        %v972 = vpack.c.bf16 %v960, %v959
        %v973 = vpack.c.bf16 %v962, %v961
        %v974 = vpack.c.bf16 %v964, %v963
        %v975 = vpack.c.bf16 %v966, %v965
        %v976 = vpack.c.bf16 %v968, %v967
        %977 = vmatprep.subr.bf16.mxu0 0
        %978 = vmatpush1.bf16.msra.mxu0 %v969
        %979 = vmatprep.subr.bf16.mxu0 0
        %980 = vmatpush1.bf16.msra.mxu0 %v970
        %981 = vmatprep.subr.bf16.mxu0 0
        %982 = vmatpush1.bf16.msra.mxu0 %v971
        %983 = vmatprep.subr.bf16.mxu0 0
        %984 = vmatpush1.bf16.msra.mxu0 %v972
        %985 = vmatprep.subr.bf16.mxu0 0
        %986 = vmatpush1.bf16.msra.mxu0 %v973
        %987 = vmatprep.subr.bf16.mxu0 0
        %988 = vmatpush1.bf16.msra.mxu0 %v974
        %989 = vmatprep.subr.bf16.mxu0 0
        %990 = vmatpush1.bf16.msra.mxu0 %v975
        %991 = vmatprep.subr.bf16.mxu0 0
        %992 = vmatpush1.bf16.msra.mxu0 %v976
        %993 = vmatprep.subr.bf16.mxu0 0
        %994 = vmatpush1.bf16.msra.mxu0 0
        %995 = vmatprep.subr.bf16.mxu0 0
        %996 = vmatpush1.bf16.msra.mxu0 0
        %997 = vmatprep.subr.bf16.mxu0 0
        %998 = vmatpush1.bf16.msra.mxu0 0
        %999 = vmatprep.subr.bf16.mxu0 0
        %1000 = vmatpush1.bf16.msra.mxu0 0
        %1001 = vmatprep.subr.bf16.mxu0 0
        %1002 = vmatpush1.bf16.msra.mxu0 0
        %1003 = vmatprep.subr.bf16.mxu0 0
        %1004 = vmatpush1.bf16.msra.mxu0 0
        %1005 = vmatprep.subr.bf16.mxu0 0
        %1006 = vmatpush1.bf16.msra.mxu0 0
        %1007 = vmatprep.subr.bf16.mxu0 0
        %1008 = vmatpush1.bf16.msra.mxu0 0
        %1009 = vmatprep.mubr.bf16.mxu0 0
        %1010 = vmatmul.mubr.bf16.gmra.mrb[0].mxu0 %v616
        %v1011 = vpop.f32.mrb[0].mxu0
        %v1012 = vadd.f32 0.0, %v1011
        %v1013 = vpop.f32.mrb[0].mxu0
        %v1014 = vpop.f32.mrb[0].mxu0
        %v1015 = vadd.f32 0.0, %v1014
        %v1016 = vpop.f32.mrb[0].mxu0
        %1017 = vmatprep.mubr.bf16.mxu0 0
        %1018 = vmatmul.mubr.bf16.gmra.mrb[0].mxu0 %v617
        %v1019 = vpop.f32.mrb[0].mxu0
        %v1020 = vadd.f32 0.0, %v1019
        %v1021 = vpop.f32.mrb[0].mxu0
        %v1022 = vpop.f32.mrb[0].mxu0
        %v1023 = vadd.f32 0.0, %v1022
        %v1024 = vpop.f32.mrb[0].mxu0
        %1025 = vmatprep.mubr.bf16.mxu0 0
        %1026 = vmatmul.mubr.bf16.gmra.mrb[0].mxu0 %v618
        %v1027 = vpop.f32.mrb[0].mxu0
        %v1028 = vadd.f32 0.0, %v1027
        %v1029 = vpop.f32.mrb[0].mxu0
        %v1030 = vpop.f32.mrb[0].mxu0
        %v1031 = vadd.f32 0.0, %v1030
        %v1032 = vpop.f32.mrb[0].mxu0
        %1033 = vmatprep.mubr.bf16.mxu0 0
        %1034 = vmatmul.mubr.bf16.gmra.mrb[0].mxu0 %v619
        %v1035 = vpop.f32.mrb[0].mxu0
        %v1036 = vadd.f32 0.0, %v1035
        %v1037 = vpop.f32.mrb[0].mxu0
        %v1038 = vpop.f32.mrb[0].mxu0
        %v1039 = vadd.f32 0.0, %v1038
        %v1040 = vpop.f32.mrb[0].mxu0
        %1041 = vmatprep.mubr.bf16.mxu0 0
        %1042 = vmatmul.mubr.bf16.gmra.mrb[0].mxu0 %v620
        %v1043 = vpop.f32.mrb[0].mxu0
        %v1044 = vadd.f32 0.0, %v1043
        %v1045 = vpop.f32.mrb[0].mxu0
        %v1046 = vpop.f32.mrb[0].mxu0
        %v1047 = vadd.f32 0.0, %v1046
        %v1048 = vpop.f32.mrb[0].mxu0
        %1049 = vmatprep.mubr.bf16.mxu0 0
        %1050 = vmatmul.mubr.bf16.gmra.mrb[0].mxu0 %v621
        %v1051 = vpop.f32.mrb[0].mxu0
        %v1052 = vadd.f32 0.0, %v1051
        %v1053 = vpop.f32.mrb[0].mxu0
        %v1054 = vpop.f32.mrb[0].mxu0
        %v1055 = vadd.f32 0.0, %v1054
        %v1056 = vpop.f32.mrb[0].mxu0
        %1057 = vmatprep.mubr.bf16.mxu0 0
        %1058 = vmatmul.mubr.bf16.gmra.mrb[0].mxu0 %v622
        %v1059 = vpop.f32.mrb[0].mxu0
        %v1060 = vadd.f32 0.0, %v1059
        %v1061 = vpop.f32.mrb[0].mxu0
        %v1062 = vpop.f32.mrb[0].mxu0
        %v1063 = vadd.f32 0.0, %v1062
        %v1064 = vpop.f32.mrb[0].mxu0
        %1065 = vmatprep.mubr.bf16.mxu0 0
        %1066 = vmatmul.mubr.bf16.gmra.mrb[0].mxu0 %v623
        %v1067 = vpop.f32.mrb[0].mxu0
        %v1068 = vadd.f32 0.0, %v1067
        %v1069 = vpop.f32.mrb[0].mxu0
        %v1070 = vpop.f32.mrb[0].mxu0
        %v1071 = vadd.f32 0.0, %v1070
        %v1072 = vpop.f32.mrb[0].mxu0
        %1073 = vdwg.mxu0
        %v1074 = vpack.c.bf16 %v1015, %v1012
        %v1075 = vpack.c.bf16 %v1023, %v1020
        %v1076 = vpack.c.bf16 %v1031, %v1028
        %v1077 = vpack.c.bf16 %v1039, %v1036
        %v1078 = vpack.c.bf16 %v1047, %v1044
        %v1079 = vpack.c.bf16 %v1055, %v1052
        %v1080 = vpack.c.bf16 %v1063, %v1060
        %v1081 = vpack.c.bf16 %v1071, %v1068
        %v1082 = vld [vmem:[#allocation10] sm:$0xf]
        %v1083 = vld [vmem:[#allocation10 + $0x4] sm:$0xf]
        %v1084 = vld [vmem:[#allocation10 + $0x8] sm:$0xf]
        %v1085 = vld [vmem:[#allocation10 + $0xc] sm:$0xf]
        %v1086 = vld [vmem:[#allocation10 + $0x10] sm:$0xf]
        %v1087 = vld [vmem:[#allocation10 + $0x14] sm:$0xf]
        %v1088 = vld [vmem:[#allocation10 + $0x18] sm:$0xf]
        %v1089 = vld [vmem:[#allocation10 + $0x1c] sm:$0xf]
        %v1090 = vld [vmem:[#allocation10 + $0x20] sm:$0xf]
        %v1091 = vld [vmem:[#allocation10 + $0x24] sm:$0xf]
        %v1092 = vld [vmem:[#allocation10 + $0x28] sm:$0xf]
        %v1093 = vld [vmem:[#allocation10 + $0x2c] sm:$0xf]
        %v1094 = vld [vmem:[#allocation10 + $0x30] sm:$0xf]
        %v1095 = vld [vmem:[#allocation10 + $0x34] sm:$0xf]
        %v1096 = vld [vmem:[#allocation10 + $0x38] sm:$0xf]
        %v1097 = vld [vmem:[#allocation10 + $0x3c] sm:$0xf]
        %v1098 = vld [vmem:[%s6] sm:$0x1]
        %v1100 = vlaneseq
        %v1101 = vshrl.u32 %v1100, 7
        %v1102 = vsub.s32 0, %v1101
        %v1103 = vrot.slane %v1098, %v1102
        %v1121 = vunpack.c.l.b16 %v1082
        %v1122 = vunpack.c.l.b16 %v1083
        %v1123 = vunpack.c.l.b16 %v1084
        %v1124 = vunpack.c.l.b16 %v1085
        %v1125 = vunpack.c.l.b16 %v1086
        %v1126 = vunpack.c.l.b16 %v1087
        %v1127 = vunpack.c.l.b16 %v1088
        %v1128 = vunpack.c.l.b16 %v1089
        %v1129 = vunpack.c.l.b16 %v1090
        %v1130 = vunpack.c.l.b16 %v1091
        %v1131 = vunpack.c.l.b16 %v1092
        %v1132 = vunpack.c.l.b16 %v1093
        %v1133 = vunpack.c.l.b16 %v1094
        %v1134 = vunpack.c.l.b16 %v1095
        %v1135 = vunpack.c.l.b16 %v1096
        %v1136 = vunpack.c.l.b16 %v1097
        %v1137 = vpack.c.b16 %v1122, %v1121
        %v1138 = vpack.c.b16 %v1124, %v1123
        %v1139 = vpack.c.b16 %v1126, %v1125
        %v1140 = vpack.c.b16 %v1128, %v1127
        %v1141 = vpack.c.b16 %v1130, %v1129
        %v1142 = vpack.c.b16 %v1132, %v1131
        %v1143 = vpack.c.b16 %v1134, %v1133
        %v1144 = vpack.c.b16 %v1136, %v1135
        %1153 = vmatprep.subr.bf16.mxu0 0
        %1154 = vmatpush1.bf16.msra.mxu0 %v1137
        %1155 = vmatprep.subr.bf16.mxu0 0
        %1156 = vmatpush1.bf16.msra.mxu0 %v1138
        %1157 = vmatprep.subr.bf16.mxu0 0
        %1158 = vmatpush1.bf16.msra.mxu0 %v1139
        %1159 = vmatprep.subr.bf16.mxu0 0
        %1160 = vmatpush1.bf16.msra.mxu0 %v1140
        %1161 = vmatprep.subr.bf16.mxu0 0
        %1162 = vmatpush1.bf16.msra.mxu0 %v1141
        %1163 = vmatprep.subr.bf16.mxu0 0
        %1164 = vmatpush1.bf16.msra.mxu0 %v1142
        %1165 = vmatprep.subr.bf16.mxu0 0
        %1166 = vmatpush1.bf16.msra.mxu0 %v1143
        %1167 = vmatprep.subr.bf16.mxu0 0
        %1168 = vmatpush1.bf16.msra.mxu0 %v1144
        %1169 = vmatprep.subr.bf16.mxu0 0
        %1170 = vmatpush1.bf16.msra.mxu0 0
        %1171 = vmatprep.subr.bf16.mxu0 0
        %1172 = vmatpush1.bf16.msra.mxu0 0
        %1173 = vmatprep.subr.bf16.mxu0 0
        %1174 = vmatpush1.bf16.msra.mxu0 0
        %1175 = vmatprep.subr.bf16.mxu0 0
        %1176 = vmatpush1.bf16.msra.mxu0 0
        %1177 = vmatprep.subr.bf16.mxu0 0
        %1178 = vmatpush1.bf16.msra.mxu0 0
        %1179 = vmatprep.subr.bf16.mxu0 0
        %1180 = vmatpush1.bf16.msra.mxu0 0
        %1181 = vmatprep.subr.bf16.mxu0 0
        %1182 = vmatpush1.bf16.msra.mxu0 0
        %1183 = vmatprep.subr.bf16.mxu0 0
        %1184 = vmatpush1.bf16.msra.mxu0 0
        %1185 = vmatprep.mubr.bf16.mxu0 0
        %1186 = vmatmul.mubr.bf16.gmra.mrb[0].mxu0 %v1074
        %v1187 = vpop.f32.mrb[0].mxu0
        %v1188 = vadd.f32 %v1103, %v1187
        %v1189 = vpop.f32.mrb[0].mxu0
        %v1190 = vpop.f32.mrb[0].mxu0
        %v1191 = vadd.f32 %v1103, %v1190
        %v1192 = vpop.f32.mrb[0].mxu0
        %1193 = vmatprep.mubr.bf16.mxu0 0
        %1194 = vmatmul.mubr.bf16.gmra.mrb[0].mxu0 %v1075
        %v1195 = vpop.f32.mrb[0].mxu0
        %v1196 = vadd.f32 %v1103, %v1195
        %v1197 = vpop.f32.mrb[0].mxu0
        %v1198 = vpop.f32.mrb[0].mxu0
        %v1199 = vadd.f32 %v1103, %v1198
        %v1200 = vpop.f32.mrb[0].mxu0
        %1201 = vmatprep.mubr.bf16.mxu0 0
        %1202 = vmatmul.mubr.bf16.gmra.mrb[0].mxu0 %v1076
        %v1203 = vpop.f32.mrb[0].mxu0
        %v1204 = vadd.f32 %v1103, %v1203
        %v1205 = vpop.f32.mrb[0].mxu0
        %v1206 = vpop.f32.mrb[0].mxu0
        %v1207 = vadd.f32 %v1103, %v1206
        %v1208 = vpop.f32.mrb[0].mxu0
        %1209 = vmatprep.mubr.bf16.mxu0 0
        %1210 = vmatmul.mubr.bf16.gmra.mrb[0].mxu0 %v1077
        %v1211 = vpop.f32.mrb[0].mxu0
        %v1212 = vadd.f32 %v1103, %v1211
        %v1213 = vpop.f32.mrb[0].mxu0
        %v1214 = vpop.f32.mrb[0].mxu0
        %v1215 = vadd.f32 %v1103, %v1214
        %v1216 = vpop.f32.mrb[0].mxu0
        %1217 = vmatprep.mubr.bf16.mxu0 0
        %1218 = vmatmul.mubr.bf16.gmra.mrb[0].mxu0 %v1078
        %v1219 = vpop.f32.mrb[0].mxu0
        %v1220 = vadd.f32 %v1103, %v1219
        %v1221 = vpop.f32.mrb[0].mxu0
        %v1222 = vpop.f32.mrb[0].mxu0
        %v1223 = vadd.f32 %v1103, %v1222
        %v1224 = vpop.f32.mrb[0].mxu0
        %1225 = vmatprep.mubr.bf16.mxu0 0
        %1226 = vmatmul.mubr.bf16.gmra.mrb[0].mxu0 %v1079
        %v1227 = vpop.f32.mrb[0].mxu0
        %v1228 = vadd.f32 %v1103, %v1227
        %v1229 = vpop.f32.mrb[0].mxu0
        %v1230 = vpop.f32.mrb[0].mxu0
        %v1231 = vadd.f32 %v1103, %v1230
        %v1232 = vpop.f32.mrb[0].mxu0
        %1233 = vmatprep.mubr.bf16.mxu0 0
        %1234 = vmatmul.mubr.bf16.gmra.mrb[0].mxu0 %v1080
        %v1235 = vpop.f32.mrb[0].mxu0
        %v1236 = vadd.f32 %v1103, %v1235
        %v1237 = vpop.f32.mrb[0].mxu0
        %v1238 = vpop.f32.mrb[0].mxu0
        %v1239 = vadd.f32 %v1103, %v1238
        %v1240 = vpop.f32.mrb[0].mxu0
        %1241 = vmatprep.mubr.bf16.mxu0 0
        %1242 = vmatmul.mubr.bf16.gmra.mrb[0].mxu0 %v1081
        %v1243 = vpop.f32.mrb[0].mxu0
        %v1244 = vadd.f32 %v1103, %v1243
        %v1245 = vpop.f32.mrb[0].mxu0
        %v1246 = vpop.f32.mrb[0].mxu0
        %v1247 = vadd.f32 %v1103, %v1246
        %v1248 = vpop.f32.mrb[0].mxu0
        %1249 = vdwg.mxu0
        %v1250 = vmax.f32 %v1188, 0.0
        %v1251 = vmax.f32 %v1191, 0.0
        %v1252 = vmax.f32 %v1196, 0.0
        %v1253 = vmax.f32 %v1199, 0.0
        %v1254 = vmax.f32 %v1204, 0.0
        %v1255 = vmax.f32 %v1207, 0.0
        %v1256 = vmax.f32 %v1212, 0.0
        %v1257 = vmax.f32 %v1215, 0.0
        %v1258 = vmax.f32 %v1220, 0.0
        %v1259 = vmax.f32 %v1223, 0.0
        %v1260 = vmax.f32 %v1228, 0.0
        %v1261 = vmax.f32 %v1231, 0.0
        %v1262 = vmax.f32 %v1236, 0.0
        %v1263 = vmax.f32 %v1239, 0.0
        %v1264 = vmax.f32 %v1244, 0.0
        %v1265 = vmax.f32 %v1247, 0.0
        %v1266 = vpack.c.bf16 %v1251, %v1250
        %v1267 = vpack.c.bf16 %v1253, %v1252
        %v1268 = vpack.c.bf16 %v1255, %v1254
        %v1269 = vpack.c.bf16 %v1257, %v1256
        %v1270 = vpack.c.bf16 %v1259, %v1258
        %v1271 = vpack.c.bf16 %v1261, %v1260
        %v1272 = vpack.c.bf16 %v1263, %v1262
        %v1273 = vpack.c.bf16 %v1265, %v1264
        %1274 = vmatprep.subr.bf16.mxu0 0
        %1275 = vmatpush1.bf16.msra.mxu0 %v1266
        %1276 = vmatprep.subr.bf16.mxu0 0
        %1277 = vmatpush1.bf16.msra.mxu0 %v1267
        %1278 = vmatprep.subr.bf16.mxu0 0
        %1279 = vmatpush1.bf16.msra.mxu0 %v1268
        %1280 = vmatprep.subr.bf16.mxu0 0
        %1281 = vmatpush1.bf16.msra.mxu0 %v1269
        %1282 = vmatprep.subr.bf16.mxu0 0
        %1283 = vmatpush1.bf16.msra.mxu0 %v1270
        %1284 = vmatprep.subr.bf16.mxu0 0
        %1285 = vmatpush1.bf16.msra.mxu0 %v1271
        %1286 = vmatprep.subr.bf16.mxu0 0
        %1287 = vmatpush1.bf16.msra.mxu0 %v1272
        %1288 = vmatprep.subr.bf16.mxu0 0
        %1289 = vmatpush1.bf16.msra.mxu0 %v1273
        %1290 = vmatprep.subr.bf16.mxu0 0
        %1291 = vmatpush1.bf16.msra.mxu0 0
        %1292 = vmatprep.subr.bf16.mxu0 0
        %1293 = vmatpush1.bf16.msra.mxu0 0
        %1294 = vmatprep.subr.bf16.mxu0 0
        %1295 = vmatpush1.bf16.msra.mxu0 0
        %1296 = vmatprep.subr.bf16.mxu0 0
        %1297 = vmatpush1.bf16.msra.mxu0 0
        %1298 = vmatprep.subr.bf16.mxu0 0
        %1299 = vmatpush1.bf16.msra.mxu0 0
        %1300 = vmatprep.subr.bf16.mxu0 0
        %1301 = vmatpush1.bf16.msra.mxu0 0
        %1302 = vmatprep.subr.bf16.mxu0 0
        %1303 = vmatpush1.bf16.msra.mxu0 0
        %1304 = vmatprep.subr.bf16.mxu0 0
        %1305 = vmatpush1.bf16.msra.mxu0 0
        %1306 = vmatprep.mubr.bf16.mxu0 0
        %1307 = vmatmul.mubr.bf16.gmra.mrb[0].mxu0 %v616
        %v1308 = vpop.f32.mrb[0].mxu0
        %v1309 = vadd.f32 0.0, %v1308
        %v1310 = vpop.f32.mrb[0].mxu0
        %v1311 = vpop.f32.mrb[0].mxu0
        %v1312 = vadd.f32 0.0, %v1311
        %v1313 = vpop.f32.mrb[0].mxu0
        %1314 = vmatprep.mubr.bf16.mxu0 0
        %1315 = vmatmul.mubr.bf16.gmra.mrb[0].mxu0 %v617
        %v1316 = vpop.f32.mrb[0].mxu0
        %v1317 = vadd.f32 0.0, %v1316
        %v1318 = vpop.f32.mrb[0].mxu0
        %v1319 = vpop.f32.mrb[0].mxu0
        %v1320 = vadd.f32 0.0, %v1319
        %v1321 = vpop.f32.mrb[0].mxu0
        %1322 = vmatprep.mubr.bf16.mxu0 0
        %1323 = vmatmul.mubr.bf16.gmra.mrb[0].mxu0 %v618
        %v1324 = vpop.f32.mrb[0].mxu0
        %v1325 = vadd.f32 0.0, %v1324
        %v1326 = vpop.f32.mrb[0].mxu0
        %v1327 = vpop.f32.mrb[0].mxu0
        %v1328 = vadd.f32 0.0, %v1327
        %v1329 = vpop.f32.mrb[0].mxu0
        %1330 = vmatprep.mubr.bf16.mxu0 0
        %1331 = vmatmul.mubr.bf16.gmra.mrb[0].mxu0 %v619
        %v1332 = vpop.f32.mrb[0].mxu0
        %v1333 = vadd.f32 0.0, %v1332
        %v1334 = vpop.f32.mrb[0].mxu0
        %v1335 = vpop.f32.mrb[0].mxu0
        %v1336 = vadd.f32 0.0, %v1335
        %v1337 = vpop.f32.mrb[0].mxu0
        %1338 = vmatprep.mubr.bf16.mxu0 0
        %1339 = vmatmul.mubr.bf16.gmra.mrb[0].mxu0 %v620
        %v1340 = vpop.f32.mrb[0].mxu0
        %v1341 = vadd.f32 0.0, %v1340
        %v1342 = vpop.f32.mrb[0].mxu0
        %v1343 = vpop.f32.mrb[0].mxu0
        %v1344 = vadd.f32 0.0, %v1343
        %v1345 = vpop.f32.mrb[0].mxu0
        %1346 = vmatprep.mubr.bf16.mxu0 0
        %1347 = vmatmul.mubr.bf16.gmra.mrb[0].mxu0 %v621
        %v1348 = vpop.f32.mrb[0].mxu0
        %v1349 = vadd.f32 0.0, %v1348
        %v1350 = vpop.f32.mrb[0].mxu0
        %v1351 = vpop.f32.mrb[0].mxu0
        %v1352 = vadd.f32 0.0, %v1351
        %v1353 = vpop.f32.mrb[0].mxu0
        %1354 = vmatprep.mubr.bf16.mxu0 0
        %1355 = vmatmul.mubr.bf16.gmra.mrb[0].mxu0 %v622
        %v1356 = vpop.f32.mrb[0].mxu0
        %v1357 = vadd.f32 0.0, %v1356
        %v1358 = vpop.f32.mrb[0].mxu0
        %v1359 = vpop.f32.mrb[0].mxu0
        %v1360 = vadd.f32 0.0, %v1359
        %v1361 = vpop.f32.mrb[0].mxu0
        %1362 = vmatprep.mubr.bf16.mxu0 0
        %1363 = vmatmul.mubr.bf16.gmra.mrb[0].mxu0 %v623
        %v1364 = vpop.f32.mrb[0].mxu0
        %v1365 = vadd.f32 0.0, %v1364
        %v1366 = vpop.f32.mrb[0].mxu0
        %v1367 = vpop.f32.mrb[0].mxu0
        %v1368 = vadd.f32 0.0, %v1367
        %v1369 = vpop.f32.mrb[0].mxu0
        %1370 = vdwg.mxu0
        %v1371 = vpack.c.bf16 %v1312, %v1309
        %v1372 = vpack.c.bf16 %v1320, %v1317
        %v1373 = vpack.c.bf16 %v1328, %v1325
        %v1374 = vpack.c.bf16 %v1336, %v1333
        %v1375 = vpack.c.bf16 %v1344, %v1341
        %v1376 = vpack.c.bf16 %v1352, %v1349
        %v1377 = vpack.c.bf16 %v1360, %v1357
        %v1378 = vpack.c.bf16 %v1368, %v1365
        %v1379 = vld [vmem:[#allocation12] sm:$0xff]
        %v1380 = vld [vmem:[#allocation12 + $0x8] sm:$0xff]
        %v1381 = vld [vmem:[#allocation12 + $0x10] sm:$0xff]
        %v1382 = vld [vmem:[#allocation12 + $0x18] sm:$0xff]
        %v1383 = vld [vmem:[#allocation12 + $0x20] sm:$0xff]
        %v1384 = vld [vmem:[#allocation12 + $0x28] sm:$0xff]
        %v1385 = vld [vmem:[#allocation12 + $0x30] sm:$0xff]
        %v1386 = vld [vmem:[#allocation12 + $0x38] sm:$0xff]
        %v1387 = vld [vmem:[#allocation12 + $0x40] sm:$0xff]
        %v1388 = vld [vmem:[#allocation12 + $0x48] sm:$0xff]
        %v1389 = vld [vmem:[#allocation12 + $0x50] sm:$0xff]
        %v1390 = vld [vmem:[#allocation12 + $0x58] sm:$0xff]
        %v1391 = vld [vmem:[#allocation12 + $0x60] sm:$0xff]
        %v1392 = vld [vmem:[#allocation12 + $0x68] sm:$0xff]
        %v1393 = vld [vmem:[#allocation12 + $0x70] sm:$0xff]
        %v1394 = vld [vmem:[#allocation12 + $0x78] sm:$0xff]
        %v1395 = vld [vmem:[%s8] sm:$0x3]
        %v1397 = vlaneseq
        %v1398 = vshrl.u32 %v1397, 7
        %v1399 = vsub.s32 0, %v1398
        %v1400 = vrot.slane %v1395, %v1399
        %v1401 = vlaneseq
        %v1402 = vshrl.u32 %v1401, 7
        %v1403 = vsub.s32 1, %v1402
        %v1404 = vrot.slane %v1395, %v1403
        %v1423 = vunpack.c.l.b16 %v1379
        %v1424 = vunpack.c.h.b16 %v1379
        %v1425 = vunpack.c.l.b16 %v1380
        %v1426 = vunpack.c.h.b16 %v1380
        %v1427 = vunpack.c.l.b16 %v1381
        %v1428 = vunpack.c.h.b16 %v1381
        %v1429 = vunpack.c.l.b16 %v1382
        %v1430 = vunpack.c.h.b16 %v1382
        %v1431 = vunpack.c.l.b16 %v1383
        %v1432 = vunpack.c.h.b16 %v1383
        %v1433 = vunpack.c.l.b16 %v1384
        %v1434 = vunpack.c.h.b16 %v1384
        %v1435 = vunpack.c.l.b16 %v1385
        %v1436 = vunpack.c.h.b16 %v1385
        %v1437 = vunpack.c.l.b16 %v1386
        %v1438 = vunpack.c.h.b16 %v1386
        %v1439 = vunpack.c.l.b16 %v1387
        %v1440 = vunpack.c.h.b16 %v1387
        %v1441 = vunpack.c.l.b16 %v1388
        %v1442 = vunpack.c.h.b16 %v1388
        %v1443 = vunpack.c.l.b16 %v1389
        %v1444 = vunpack.c.h.b16 %v1389
        %v1445 = vunpack.c.l.b16 %v1390
        %v1446 = vunpack.c.h.b16 %v1390
        %v1447 = vunpack.c.l.b16 %v1391
        %v1448 = vunpack.c.h.b16 %v1391
        %v1449 = vunpack.c.l.b16 %v1392
        %v1450 = vunpack.c.h.b16 %v1392
        %v1451 = vunpack.c.l.b16 %v1393
        %v1452 = vunpack.c.h.b16 %v1393
        %v1453 = vunpack.c.l.b16 %v1394
        %v1454 = vunpack.c.h.b16 %v1394
        %v1455 = vpack.c.b16 %v1425, %v1423
        %v1456 = vpack.c.b16 %v1426, %v1424
        %v1457 = vpack.c.b16 %v1429, %v1427
        %v1458 = vpack.c.b16 %v1430, %v1428
        %v1459 = vpack.c.b16 %v1433, %v1431
        %v1460 = vpack.c.b16 %v1434, %v1432
        %v1461 = vpack.c.b16 %v1437, %v1435
        %v1462 = vpack.c.b16 %v1438, %v1436
        %v1463 = vpack.c.b16 %v1441, %v1439
        %v1464 = vpack.c.b16 %v1442, %v1440
        %v1465 = vpack.c.b16 %v1445, %v1443
        %v1466 = vpack.c.b16 %v1446, %v1444
        %v1467 = vpack.c.b16 %v1449, %v1447
        %v1468 = vpack.c.b16 %v1450, %v1448
        %v1469 = vpack.c.b16 %v1453, %v1451
        %v1470 = vpack.c.b16 %v1454, %v1452
        %1487 = vmatprep.subr.bf16.mxu0 %v1456
        %1488 = vmatpush1.bf16.msra.mxu0 %v1455
        %1489 = vmatprep.subr.bf16.mxu0 %v1458
        %1490 = vmatpush1.bf16.msra.mxu0 %v1457
        %1491 = vmatprep.subr.bf16.mxu0 %v1460
        %1492 = vmatpush1.bf16.msra.mxu0 %v1459
        %1493 = vmatprep.subr.bf16.mxu0 %v1462
        %1494 = vmatpush1.bf16.msra.mxu0 %v1461
        %1495 = vmatprep.subr.bf16.mxu0 %v1464
        %1496 = vmatpush1.bf16.msra.mxu0 %v1463
        %1497 = vmatprep.subr.bf16.mxu0 %v1466
        %1498 = vmatpush1.bf16.msra.mxu0 %v1465
        %1499 = vmatprep.subr.bf16.mxu0 %v1468
        %1500 = vmatpush1.bf16.msra.mxu0 %v1467
        %1501 = vmatprep.subr.bf16.mxu0 %v1470
        %1502 = vmatpush1.bf16.msra.mxu0 %v1469
        %1503 = vmatprep.subr.bf16.mxu0 0
        %1504 = vmatpush1.bf16.msra.mxu0 0
        %1505 = vmatprep.subr.bf16.mxu0 0
        %1506 = vmatpush1.bf16.msra.mxu0 0
        %1507 = vmatprep.subr.bf16.mxu0 0
        %1508 = vmatpush1.bf16.msra.mxu0 0
        %1509 = vmatprep.subr.bf16.mxu0 0
        %1510 = vmatpush1.bf16.msra.mxu0 0
        %1511 = vmatprep.subr.bf16.mxu0 0
        %1512 = vmatpush1.bf16.msra.mxu0 0
        %1513 = vmatprep.subr.bf16.mxu0 0
        %1514 = vmatpush1.bf16.msra.mxu0 0
        %1515 = vmatprep.subr.bf16.mxu0 0
        %1516 = vmatpush1.bf16.msra.mxu0 0
        %1517 = vmatprep.subr.bf16.mxu0 0
        %1518 = vmatpush1.bf16.msra.mxu0 0
        %1519 = vmatprep.mubr.bf16.mxu0 0
        %1520 = vmatmul.mubr.bf16.gmra.mrb[0].mxu0 %v1371
        %v1521 = vpop.f32.mrb[0].mxu0
        %v1522 = vadd.f32 %v1400, %v1521
        %v1523 = vpop.f32.mrb[0].mxu0
        %v1524 = vadd.f32 %v1404, %v1523
        %v1525 = vpop.f32.mrb[0].mxu0
        %v1526 = vadd.f32 %v1400, %v1525
        %v1527 = vpop.f32.mrb[0].mxu0
        %v1528 = vadd.f32 %v1404, %v1527
        %1529 = vmatprep.mubr.bf16.mxu0 0
        %1530 = vmatmul.mubr.bf16.gmra.mrb[0].mxu0 %v1372
        %v1531 = vpop.f32.mrb[0].mxu0
        %v1532 = vadd.f32 %v1400, %v1531
        %v1533 = vpop.f32.mrb[0].mxu0
        %v1534 = vadd.f32 %v1404, %v1533
        %v1535 = vpop.f32.mrb[0].mxu0
        %v1536 = vadd.f32 %v1400, %v1535
        %v1537 = vpop.f32.mrb[0].mxu0
        %v1538 = vadd.f32 %v1404, %v1537
        %1539 = vmatprep.mubr.bf16.mxu0 0
        %1540 = vmatmul.mubr.bf16.gmra.mrb[0].mxu0 %v1373
        %v1541 = vpop.f32.mrb[0].mxu0
        %v1542 = vadd.f32 %v1400, %v1541
        %v1543 = vpop.f32.mrb[0].mxu0
        %v1544 = vadd.f32 %v1404, %v1543
        %v1545 = vpop.f32.mrb[0].mxu0
        %v1546 = vadd.f32 %v1400, %v1545
        %v1547 = vpop.f32.mrb[0].mxu0
        %v1548 = vadd.f32 %v1404, %v1547
        %1549 = vmatprep.mubr.bf16.mxu0 0
        %1550 = vmatmul.mubr.bf16.gmra.mrb[0].mxu0 %v1374
        %v1551 = vpop.f32.mrb[0].mxu0
        %v1552 = vadd.f32 %v1400, %v1551
        %v1553 = vpop.f32.mrb[0].mxu0
        %v1554 = vadd.f32 %v1404, %v1553
        %v1555 = vpop.f32.mrb[0].mxu0
        %v1556 = vadd.f32 %v1400, %v1555
        %v1557 = vpop.f32.mrb[0].mxu0
        %v1558 = vadd.f32 %v1404, %v1557
        %1559 = vmatprep.mubr.bf16.mxu0 0
        %1560 = vmatmul.mubr.bf16.gmra.mrb[0].mxu0 %v1375
        %v1561 = vpop.f32.mrb[0].mxu0
        %v1562 = vadd.f32 %v1400, %v1561
        %v1563 = vpop.f32.mrb[0].mxu0
        %v1564 = vadd.f32 %v1404, %v1563
        %v1565 = vpop.f32.mrb[0].mxu0
        %v1566 = vadd.f32 %v1400, %v1565
        %v1567 = vpop.f32.mrb[0].mxu0
        %v1568 = vadd.f32 %v1404, %v1567
        %1569 = vmatprep.mubr.bf16.mxu0 0
        %1570 = vmatmul.mubr.bf16.gmra.mrb[0].mxu0 %v1376
        %v1571 = vpop.f32.mrb[0].mxu0
        %v1572 = vadd.f32 %v1400, %v1571
        %v1573 = vpop.f32.mrb[0].mxu0
        %v1574 = vadd.f32 %v1404, %v1573
        %v1575 = vpop.f32.mrb[0].mxu0
        %v1576 = vadd.f32 %v1400, %v1575
        %v1577 = vpop.f32.mrb[0].mxu0
        %v1578 = vadd.f32 %v1404, %v1577
        %1579 = vmatprep.mubr.bf16.mxu0 0
        %1580 = vmatmul.mubr.bf16.gmra.mrb[0].mxu0 %v1377
        %v1581 = vpop.f32.mrb[0].mxu0
        %v1582 = vadd.f32 %v1400, %v1581
        %v1583 = vpop.f32.mrb[0].mxu0
        %v1584 = vadd.f32 %v1404, %v1583
        %v1585 = vpop.f32.mrb[0].mxu0
        %v1586 = vadd.f32 %v1400, %v1585
        %v1587 = vpop.f32.mrb[0].mxu0
        %v1588 = vadd.f32 %v1404, %v1587
        %1589 = vmatprep.mubr.bf16.mxu0 0
        %1590 = vmatmul.mubr.bf16.gmra.mrb[0].mxu0 %v1378
        %v1591 = vpop.f32.mrb[0].mxu0
        %v1592 = vadd.f32 %v1400, %v1591
        %v1593 = vpop.f32.mrb[0].mxu0
        %v1594 = vadd.f32 %v1404, %v1593
        %v1595 = vpop.f32.mrb[0].mxu0
        %v1596 = vadd.f32 %v1400, %v1595
        %v1597 = vpop.f32.mrb[0].mxu0
        %v1598 = vadd.f32 %v1404, %v1597
        %1599 = vdwg.mxu0
        %v1600 = vmax.f32 %v1522, 0.0
        %v1601 = vmax.f32 %v1524, 0.0
        %v1602 = vmax.f32 %v1526, 0.0
        %v1603 = vmax.f32 %v1528, 0.0
        %v1604 = vmax.f32 %v1532, 0.0
        %v1605 = vmax.f32 %v1534, 0.0
        %v1606 = vmax.f32 %v1536, 0.0
        %v1607 = vmax.f32 %v1538, 0.0
        %v1608 = vmax.f32 %v1542, 0.0
        %v1609 = vmax.f32 %v1544, 0.0
        %v1610 = vmax.f32 %v1546, 0.0
        %v1611 = vmax.f32 %v1548, 0.0
        %v1612 = vmax.f32 %v1552, 0.0
        %v1613 = vmax.f32 %v1554, 0.0
        %v1614 = vmax.f32 %v1556, 0.0
        %v1615 = vmax.f32 %v1558, 0.0
        %v1616 = vmax.f32 %v1562, 0.0
        %v1617 = vmax.f32 %v1564, 0.0
        %v1618 = vmax.f32 %v1566, 0.0
        %v1619 = vmax.f32 %v1568, 0.0
        %v1620 = vmax.f32 %v1572, 0.0
        %v1621 = vmax.f32 %v1574, 0.0
        %v1622 = vmax.f32 %v1576, 0.0
        %v1623 = vmax.f32 %v1578, 0.0
        %v1624 = vmax.f32 %v1582, 0.0
        %v1625 = vmax.f32 %v1584, 0.0
        %v1626 = vmax.f32 %v1586, 0.0
        %v1627 = vmax.f32 %v1588, 0.0
        %v1628 = vmax.f32 %v1592, 0.0
        %v1629 = vmax.f32 %v1594, 0.0
        %v1630 = vmax.f32 %v1596, 0.0
        %v1631 = vmax.f32 %v1598, 0.0
        %v1632 = vpack.c.bf16 %v1602, %v1600
        %v1633 = vpack.c.bf16 %v1603, %v1601
        %v1634 = vpack.c.bf16 %v1606, %v1604
        %v1635 = vpack.c.bf16 %v1607, %v1605
        %v1636 = vpack.c.bf16 %v1610, %v1608
        %v1637 = vpack.c.bf16 %v1611, %v1609
        %v1638 = vpack.c.bf16 %v1614, %v1612
        %v1639 = vpack.c.bf16 %v1615, %v1613
        %v1640 = vpack.c.bf16 %v1618, %v1616
        %v1641 = vpack.c.bf16 %v1619, %v1617
        %v1642 = vpack.c.bf16 %v1622, %v1620
        %v1643 = vpack.c.bf16 %v1623, %v1621
        %v1644 = vpack.c.bf16 %v1626, %v1624
        %v1645 = vpack.c.bf16 %v1627, %v1625
        %v1646 = vpack.c.bf16 %v1630, %v1628
        %v1647 = vpack.c.bf16 %v1631, %v1629
        %v1648 = vlaneseq
        %v1649 = vshrl.u32 %v1648, 7
        %v1650 = vadd.s32 %v1649, 8
        %v1651 = vadd.s32 %v1649, 16
        %v1652 = vadd.s32 %v1649, 24
        %v1653 = vadd.s32 %v1649, 32
        %v1654 = vadd.s32 %v1649, 40
        %v1655 = vadd.s32 %v1649, 48
        %v1656 = vadd.s32 %v1649, 56
        %v1657 = vadd.s32 %v1649, 64
        %v1658 = vadd.s32 %v1649, 72
        %v1659 = vadd.s32 %v1649, 80
        %v1660 = vadd.s32 %v1649, 88
        %v1661 = vadd.s32 %v1649, 96
        %v1662 = vadd.s32 %v1649, 104
        %v1663 = vadd.s32 %v1649, 112
        %v1664 = vadd.s32 %v1649, 120
        %v1665 = vstv %s551
        %vm1666 = vcmp.lt.s32.totalorder %v1649, %v1665
        %vm1667 = vcmp.lt.s32.totalorder %v1650, %v1665
        %vm1668 = vcmp.lt.s32.totalorder %v1651, %v1665
        %vm1669 = vcmp.lt.s32.totalorder %v1652, %v1665
        %vm1670 = vcmp.lt.s32.totalorder %v1653, %v1665
        %vm1671 = vcmp.lt.s32.totalorder %v1654, %v1665
        %vm1672 = vcmp.lt.s32.totalorder %v1655, %v1665
        %vm1673 = vcmp.lt.s32.totalorder %v1656, %v1665
        %vm1674 = vcmp.lt.s32.totalorder %v1657, %v1665
        %vm1675 = vcmp.lt.s32.totalorder %v1658, %v1665
        %vm1676 = vcmp.lt.s32.totalorder %v1659, %v1665
        %vm1677 = vcmp.lt.s32.totalorder %v1660, %v1665
        %vm1678 = vcmp.lt.s32.totalorder %v1661, %v1665
        %vm1679 = vcmp.lt.s32.totalorder %v1662, %v1665
        %vm1680 = vcmp.lt.s32.totalorder %v1663, %v1665
        %vm1681 = vcmp.lt.s32.totalorder %v1664, %v1665
        %v1682 = vsel %vm1666, 1, 0
        %v1683 = vsel %vm1667, 1, 0
        %v1684 = vsel %vm1668, 1, 0
        %v1685 = vsel %vm1669, 1, 0
        %v1686 = vsel %vm1670, 1, 0
        %v1687 = vsel %vm1671, 1, 0
        %v1688 = vsel %vm1672, 1, 0
        %v1689 = vsel %vm1673, 1, 0
        %v1690 = vsel %vm1674, 1, 0
        %v1691 = vsel %vm1675, 1, 0
        %v1692 = vsel %vm1676, 1, 0
        %v1693 = vsel %vm1677, 1, 0
        %v1694 = vsel %vm1678, 1, 0
        %v1695 = vsel %vm1679, 1, 0
        %v1696 = vsel %vm1680, 1, 0
        %v1697 = vsel %vm1681, 1, 0
        %vm1698 = vcmp.eq.s32.totalorder %v1682, 1
        %vm1699 = vcmp.eq.s32.totalorder %v1683, 1
        %vm1700 = vcmp.eq.s32.totalorder %v1684, 1
        %vm1701 = vcmp.eq.s32.totalorder %v1685, 1
        %vm1702 = vcmp.eq.s32.totalorder %v1686, 1
        %vm1703 = vcmp.eq.s32.totalorder %v1687, 1
        %vm1704 = vcmp.eq.s32.totalorder %v1688, 1
        %vm1705 = vcmp.eq.s32.totalorder %v1689, 1
        %vm1706 = vcmp.eq.s32.totalorder %v1690, 1
        %vm1707 = vcmp.eq.s32.totalorder %v1691, 1
        %vm1708 = vcmp.eq.s32.totalorder %v1692, 1
        %vm1709 = vcmp.eq.s32.totalorder %v1693, 1
        %vm1710 = vcmp.eq.s32.totalorder %v1694, 1
        %vm1711 = vcmp.eq.s32.totalorder %v1695, 1
        %vm1712 = vcmp.eq.s32.totalorder %v1696, 1
        %vm1713 = vcmp.eq.s32.totalorder %v1697, 1
        %vm1714 = vmpackc.low %vm1698, %vm1698
        %vm1715 = vmpackc.low %vm1699, %vm1699
        %vm1716 = vmpackc.low %vm1700, %vm1700
        %vm1717 = vmpackc.low %vm1701, %vm1701
        %vm1718 = vmpackc.low %vm1702, %vm1702
        %vm1719 = vmpackc.low %vm1703, %vm1703
        %vm1720 = vmpackc.low %vm1704, %vm1704
        %vm1721 = vmpackc.low %vm1705, %vm1705
        %vm1722 = vmpackc.low %vm1706, %vm1706
        %vm1723 = vmpackc.low %vm1707, %vm1707
        %vm1724 = vmpackc.low %vm1708, %vm1708
        %vm1725 = vmpackc.low %vm1709, %vm1709
        %vm1726 = vmpackc.low %vm1710, %vm1710
        %vm1727 = vmpackc.low %vm1711, %vm1711
        %vm1728 = vmpackc.low %vm1712, %vm1712
        %vm1729 = vmpackc.low %vm1713, %vm1713
        %v1730 = vsel %vm1714, 65537, 0
        %v1731 = vsel %vm1715, 65537, 0
        %v1732 = vsel %vm1716, 65537, 0
        %v1733 = vsel %vm1717, 65537, 0
        %v1734 = vsel %vm1718, 65537, 0
        %v1735 = vsel %vm1719, 65537, 0
        %v1736 = vsel %vm1720, 65537, 0
        %v1737 = vsel %vm1721, 65537, 0
        %v1738 = vsel %vm1722, 65537, 0
        %v1739 = vsel %vm1723, 65537, 0
        %v1740 = vsel %vm1724, 65537, 0
        %v1741 = vsel %vm1725, 65537, 0
        %v1742 = vsel %vm1726, 65537, 0
        %v1743 = vsel %vm1727, 65537, 0
        %v1744 = vsel %vm1728, 65537, 0
        %v1745 = vsel %vm1729, 65537, 0
        %v1746 = vunpack.c.l.b16 %v1730
        %v1747 = vunpack.c.l.b16 %v1731
        %v1748 = vunpack.c.l.b16 %v1732
        %v1749 = vunpack.c.l.b16 %v1733
        %v1750 = vunpack.c.l.b16 %v1734
        %v1751 = vunpack.c.l.b16 %v1735
        %v1752 = vunpack.c.l.b16 %v1736
        %v1753 = vunpack.c.l.b16 %v1737
        %v1754 = vunpack.c.l.b16 %v1738
        %v1755 = vunpack.c.l.b16 %v1739
        %v1756 = vunpack.c.l.b16 %v1740
        %v1757 = vunpack.c.l.b16 %v1741
        %v1758 = vunpack.c.l.b16 %v1742
        %v1759 = vunpack.c.l.b16 %v1743
        %v1760 = vunpack.c.l.b16 %v1744
        %v1761 = vunpack.c.l.b16 %v1745
        %v1762 = vpack.c.b16 %v1747, %v1746
        %v1763 = vpack.c.b16 %v1749, %v1748
        %v1764 = vpack.c.b16 %v1751, %v1750
        %v1765 = vpack.c.b16 %v1753, %v1752
        %v1766 = vpack.c.b16 %v1755, %v1754
        %v1767 = vpack.c.b16 %v1757, %v1756
        %v1768 = vpack.c.b16 %v1759, %v1758
        %v1769 = vpack.c.b16 %v1761, %v1760
        %vm1770 = vcmp.ne.s16.totalorder %v1762, 0
        %vm1771 = vcmp.ne.s16.totalorder %v1763, 0
        %vm1772 = vcmp.ne.s16.totalorder %v1764, 0
        %vm1773 = vcmp.ne.s16.totalorder %v1765, 0
        %vm1774 = vcmp.ne.s16.totalorder %v1766, 0
        %vm1775 = vcmp.ne.s16.totalorder %v1767, 0
        %vm1776 = vcmp.ne.s16.totalorder %v1768, 0
        %vm1777 = vcmp.ne.s16.totalorder %v1769, 0
        %v1778 = vsel %vm1770, %v1632, 0
        %v1779 = vsel %vm1770, %v1633, 0
        %v1780 = vsel %vm1771, %v1634, 0
        %v1781 = vsel %vm1771, %v1635, 0
        %v1782 = vsel %vm1772, %v1636, 0
        %v1783 = vsel %vm1772, %v1637, 0
        %v1784 = vsel %vm1773, %v1638, 0
        %v1785 = vsel %vm1773, %v1639, 0
        %v1786 = vsel %vm1774, %v1640, 0
        %v1787 = vsel %vm1774, %v1641, 0
        %v1788 = vsel %vm1775, %v1642, 0
        %v1789 = vsel %vm1775, %v1643, 0
        %v1790 = vsel %vm1776, %v1644, 0
        %v1791 = vsel %vm1776, %v1645, 0
        %v1792 = vsel %vm1777, %v1646, 0
        %v1793 = vsel %vm1777, %v1647, 0
        %v1794 = vmax.bf16 %v1778, %v1782
        %v1795 = vmax.bf16 %v1780, %v1784
        %v1796 = vmax.bf16 %v1794, %v1786
        %v1797 = vmax.bf16 %v1795, %v1788
        %v1798 = vmax.bf16 %v1796, %v1790
        %v1799 = vmax.bf16 %v1797, %v1792
        %v1800 = vmax.bf16 %v1798, %v1799
        %v1801 = vunpack.i.l.bf16 %v1800
        %v1802 = vunpack.i.h.bf16 %v1800
        %v1803 = vmax.f32 %v1801, %v1802
        %v1804 = vrot.slane %v1803, 4
        %v1805 = vmax.f32 %v1803, %v1804
        %v1806 = vrot.slane %v1805, 2
        %v1807 = vmax.f32 %v1805, %v1806
        %v1808 = vrot.slane %v1807, 1
        %v1809 = vmax.f32 %v1807, %v1808
        %v1810 = vpack.i.bf16 %v1809, %v1809
        %v1811 = vmax.bf16 %v1779, %v1783
        %v1812 = vmax.bf16 %v1781, %v1785
        %v1813 = vmax.bf16 %v1811, %v1787
        %v1814 = vmax.bf16 %v1812, %v1789
        %v1815 = vmax.bf16 %v1813, %v1791
        %v1816 = vmax.bf16 %v1814, %v1793
        %v1817 = vmax.bf16 %v1815, %v1816
        %v1818 = vunpack.i.l.bf16 %v1817
        %v1819 = vunpack.i.h.bf16 %v1817
        %v1820 = vmax.f32 %v1818, %v1819
        %v1821 = vrot.slane %v1820, 4
        %v1822 = vmax.f32 %v1820, %v1821
        %v1823 = vrot.slane %v1822, 2
        %v1824 = vmax.f32 %v1822, %v1823
        %v1825 = vrot.slane %v1824, 1
        %v1826 = vmax.f32 %v1824, %v1825
        %v1827 = vpack.i.bf16 %v1826, %v1826
        %v1828 = vld [vmem:[#allocation13] sm:$0xff]
        %v1829 = vld [vmem:[#allocation13 + $0x8] sm:$0xff]
        %v1830 = vld [vmem:[#allocation13 + $0x10] sm:$0xff]
        %v1831 = vld [vmem:[#allocation13 + $0x18] sm:$0xff]
        %v1832 = vld [vmem:[#allocation13 + $0x20] sm:$0xff]
        %v1833 = vld [vmem:[#allocation13 + $0x28] sm:$0xff]
        %v1834 = vld [vmem:[#allocation13 + $0x30] sm:$0xff]
        %v1835 = vld [vmem:[#allocation13 + $0x38] sm:$0xff]
        %v1836 = vld [vmem:[#allocation13 + $0x40] sm:$0xff]
        %v1837 = vld [vmem:[#allocation13 + $0x48] sm:$0xff]
        %v1838 = vld [vmem:[#allocation13 + $0x50] sm:$0xff]
        %v1839 = vld [vmem:[#allocation13 + $0x58] sm:$0xff]
        %v1840 = vld [vmem:[#allocation13 + $0x60] sm:$0xff]
        %v1841 = vld [vmem:[#allocation13 + $0x68] sm:$0xff]
        %v1842 = vld [vmem:[#allocation13 + $0x70] sm:$0xff]
        %v1843 = vld [vmem:[#allocation13 + $0x78] sm:$0xff]
        %v1844 = vld [vmem:[#allocation13 + $0x80] sm:$0xff]
        %v1845 = vld [vmem:[#allocation13 + $0x88] sm:$0xff]
        %v1846 = vld [vmem:[#allocation13 + $0x90] sm:$0xff]
        %v1847 = vld [vmem:[#allocation13 + $0x98] sm:$0xff]
        %v1848 = vld [vmem:[#allocation13 + $0xa0] sm:$0xff]
        %v1849 = vld [vmem:[#allocation13 + $0xa8] sm:$0xff]
        %v1850 = vld [vmem:[#allocation13 + $0xb0] sm:$0xff]
        %v1851 = vld [vmem:[#allocation13 + $0xb8] sm:$0xff]
        %v1852 = vld [vmem:[#allocation13 + $0xc0] sm:$0xff]
        %v1853 = vld [vmem:[#allocation13 + $0xc8] sm:$0xff]
        %v1854 = vld [vmem:[#allocation13 + $0xd0] sm:$0xff]
        %v1855 = vld [vmem:[#allocation13 + $0xd8] sm:$0xff]
        %v1856 = vld [vmem:[#allocation13 + $0xe0] sm:$0xff]
        %v1857 = vld [vmem:[#allocation13 + $0xe8] sm:$0xff]
        %v1858 = vld [vmem:[#allocation13 + $0xf0] sm:$0xff]
        %v1859 = vld [vmem:[#allocation13 + $0xf8] sm:$0xff]
        %v1860 = vld [vmem:[#allocation13 + $0x100] sm:$0xff]
        %v1861 = vld [vmem:[#allocation13 + $0x108] sm:$0xff]
        %v1862 = vld [vmem:[#allocation13 + $0x110] sm:$0xff]
        %v1863 = vld [vmem:[#allocation13 + $0x118] sm:$0xff]
        %v1864 = vld [vmem:[#allocation13 + $0x120] sm:$0xff]
        %v1865 = vld [vmem:[#allocation13 + $0x128] sm:$0xff]
        %v1866 = vld [vmem:[#allocation13 + $0x130] sm:$0xff]
        %v1867 = vld [vmem:[#allocation13 + $0x138] sm:$0xff]
        %v1868 = vld [vmem:[#allocation13 + $0x140] sm:$0xff]
        %v1869 = vld [vmem:[#allocation13 + $0x148] sm:$0xff]
        %v1870 = vld [vmem:[#allocation13 + $0x150] sm:$0xff]
        %v1871 = vld [vmem:[#allocation13 + $0x158] sm:$0xff]
        %v1872 = vld [vmem:[#allocation13 + $0x160] sm:$0xff]
        %v1873 = vld [vmem:[#allocation13 + $0x168] sm:$0xff]
        %v1874 = vld [vmem:[#allocation13 + $0x170] sm:$0xff]
        %v1875 = vld [vmem:[#allocation13 + $0x178] sm:$0xff]
        %v1876 = vld [vmem:[#allocation13 + $0x180] sm:$0xff]
        %v1877 = vld [vmem:[#allocation13 + $0x188] sm:$0xff]
        %v1878 = vld [vmem:[#allocation13 + $0x190] sm:$0xff]
        %v1879 = vld [vmem:[#allocation13 + $0x198] sm:$0xff]
        %v1880 = vld [vmem:[#allocation13 + $0x1a0] sm:$0xff]
        %v1881 = vld [vmem:[#allocation13 + $0x1a8] sm:$0xff]
        %v1882 = vld [vmem:[#allocation13 + $0x1b0] sm:$0xff]
        %v1883 = vld [vmem:[#allocation13 + $0x1b8] sm:$0xff]
        %v1884 = vld [vmem:[#allocation13 + $0x1c0] sm:$0xff]
        %v1885 = vld [vmem:[#allocation13 + $0x1c8] sm:$0xff]
        %v1886 = vld [vmem:[#allocation13 + $0x1d0] sm:$0xff]
        %v1887 = vld [vmem:[#allocation13 + $0x1d8] sm:$0xff]
        %v1888 = vld [vmem:[#allocation13 + $0x1e0] sm:$0xff]
        %v1889 = vld [vmem:[#allocation13 + $0x1e8] sm:$0xff]
        %v1890 = vld [vmem:[#allocation13 + $0x1f0] sm:$0xff]
        %v1891 = vld [vmem:[#allocation13 + $0x1f8] sm:$0xff]
        %v1892 = vld [vmem:[%s10] sm:$0xf]
        %v1957 = vunpack.c.l.b16 %v1828
        %v1958 = vunpack.c.h.b16 %v1828
        %v1959 = vunpack.c.l.b16 %v1829
        %v1960 = vunpack.c.h.b16 %v1829
        %v1961 = vunpack.c.l.b16 %v1830
        %v1962 = vunpack.c.h.b16 %v1830
        %v1963 = vunpack.c.l.b16 %v1831
        %v1964 = vunpack.c.h.b16 %v1831
        %v1965 = vunpack.c.l.b16 %v1832
        %v1966 = vunpack.c.h.b16 %v1832
        %v1967 = vunpack.c.l.b16 %v1833
        %v1968 = vunpack.c.h.b16 %v1833
        %v1969 = vunpack.c.l.b16 %v1834
        %v1970 = vunpack.c.h.b16 %v1834
        %v1971 = vunpack.c.l.b16 %v1835
        %v1972 = vunpack.c.h.b16 %v1835
        %v1973 = vunpack.c.l.b16 %v1836
        %v1974 = vunpack.c.h.b16 %v1836
        %v1975 = vunpack.c.l.b16 %v1837
        %v1976 = vunpack.c.h.b16 %v1837
        %v1977 = vunpack.c.l.b16 %v1838
        %v1978 = vunpack.c.h.b16 %v1838
        %v1979 = vunpack.c.l.b16 %v1839
        %v1980 = vunpack.c.h.b16 %v1839
        %v1981 = vunpack.c.l.b16 %v1840
        %v1982 = vunpack.c.h.b16 %v1840
        %v1983 = vunpack.c.l.b16 %v1841
        %v1984 = vunpack.c.h.b16 %v1841
        %v1985 = vunpack.c.l.b16 %v1842
        %v1986 = vunpack.c.h.b16 %v1842
        %v1987 = vunpack.c.l.b16 %v1843
        %v1988 = vunpack.c.h.b16 %v1843
        %v1989 = vunpack.c.l.b16 %v1844
        %v1990 = vunpack.c.h.b16 %v1844
        %v1991 = vunpack.c.l.b16 %v1845
        %v1992 = vunpack.c.h.b16 %v1845
        %v1993 = vunpack.c.l.b16 %v1846
        %v1994 = vunpack.c.h.b16 %v1846
        %v1995 = vunpack.c.l.b16 %v1847
        %v1996 = vunpack.c.h.b16 %v1847
        %v1997 = vunpack.c.l.b16 %v1848
        %v1998 = vunpack.c.h.b16 %v1848
        %v1999 = vunpack.c.l.b16 %v1849
        %v2000 = vunpack.c.h.b16 %v1849
        %v2001 = vunpack.c.l.b16 %v1850
        %v2002 = vunpack.c.h.b16 %v1850
        %v2003 = vunpack.c.l.b16 %v1851
        %v2004 = vunpack.c.h.b16 %v1851
        %v2005 = vunpack.c.l.b16 %v1852
        %v2006 = vunpack.c.h.b16 %v1852
        %v2007 = vunpack.c.l.b16 %v1853
        %v2008 = vunpack.c.h.b16 %v1853
        %v2009 = vunpack.c.l.b16 %v1854
        %v2010 = vunpack.c.h.b16 %v1854
        %v2011 = vunpack.c.l.b16 %v1855
        %v2012 = vunpack.c.h.b16 %v1855
        %v2013 = vunpack.c.l.b16 %v1856
        %v2014 = vunpack.c.h.b16 %v1856
        %v2015 = vunpack.c.l.b16 %v1857
        %v2016 = vunpack.c.h.b16 %v1857
        %v2017 = vunpack.c.l.b16 %v1858
        %v2018 = vunpack.c.h.b16 %v1858
        %v2019 = vunpack.c.l.b16 %v1859
        %v2020 = vunpack.c.h.b16 %v1859
        %v2021 = vunpack.c.l.b16 %v1860
        %v2022 = vunpack.c.h.b16 %v1860
        %v2023 = vunpack.c.l.b16 %v1861
        %v2024 = vunpack.c.h.b16 %v1861
        %v2025 = vunpack.c.l.b16 %v1862
        %v2026 = vunpack.c.h.b16 %v1862
        %v2027 = vunpack.c.l.b16 %v1863
        %v2028 = vunpack.c.h.b16 %v1863
        %v2029 = vunpack.c.l.b16 %v1864
        %v2030 = vunpack.c.h.b16 %v1864
        %v2031 = vunpack.c.l.b16 %v1865
        %v2032 = vunpack.c.h.b16 %v1865
        %v2033 = vunpack.c.l.b16 %v1866
        %v2034 = vunpack.c.h.b16 %v1866
        %v2035 = vunpack.c.l.b16 %v1867
        %v2036 = vunpack.c.h.b16 %v1867
        %v2037 = vunpack.c.l.b16 %v1868
        %v2038 = vunpack.c.h.b16 %v1868
        %v2039 = vunpack.c.l.b16 %v1869
        %v2040 = vunpack.c.h.b16 %v1869
        %v2041 = vunpack.c.l.b16 %v1870
        %v2042 = vunpack.c.h.b16 %v1870
        %v2043 = vunpack.c.l.b16 %v1871
        %v2044 = vunpack.c.h.b16 %v1871
        %v2045 = vunpack.c.l.b16 %v1872
        %v2046 = vunpack.c.h.b16 %v1872
        %v2047 = vunpack.c.l.b16 %v1873
        %v2048 = vunpack.c.h.b16 %v1873
        %v2049 = vunpack.c.l.b16 %v1874
        %v2050 = vunpack.c.h.b16 %v1874
        %v2051 = vunpack.c.l.b16 %v1875
        %v2052 = vunpack.c.h.b16 %v1875
        %v2053 = vunpack.c.l.b16 %v1876
        %v2054 = vunpack.c.h.b16 %v1876
        %v2055 = vunpack.c.l.b16 %v1877
        %v2056 = vunpack.c.h.b16 %v1877
        %v2057 = vunpack.c.l.b16 %v1878
        %v2058 = vunpack.c.h.b16 %v1878
        %v2059 = vunpack.c.l.b16 %v1879
        %v2060 = vunpack.c.h.b16 %v1879
        %v2061 = vunpack.c.l.b16 %v1880
        %v2062 = vunpack.c.h.b16 %v1880
        %v2063 = vunpack.c.l.b16 %v1881
        %v2064 = vunpack.c.h.b16 %v1881
        %v2065 = vunpack.c.l.b16 %v1882
        %v2066 = vunpack.c.h.b16 %v1882
        %v2067 = vunpack.c.l.b16 %v1883
        %v2068 = vunpack.c.h.b16 %v1883
        %v2069 = vunpack.c.l.b16 %v1884
        %v2070 = vunpack.c.h.b16 %v1884
        %v2071 = vunpack.c.l.b16 %v1885
        %v2072 = vunpack.c.h.b16 %v1885
        %v2073 = vunpack.c.l.b16 %v1886
        %v2074 = vunpack.c.h.b16 %v1886
        %v2075 = vunpack.c.l.b16 %v1887
        %v2076 = vunpack.c.h.b16 %v1887
        %v2077 = vunpack.c.l.b16 %v1888
        %v2078 = vunpack.c.h.b16 %v1888
        %v2079 = vunpack.c.l.b16 %v1889
        %v2080 = vunpack.c.h.b16 %v1889
        %v2081 = vunpack.c.l.b16 %v1890
        %v2082 = vunpack.c.h.b16 %v1890
        %v2083 = vunpack.c.l.b16 %v1891
        %v2084 = vunpack.c.h.b16 %v1891
        %v2085 = vpack.c.b16 %v1961, %v1957
        %v2086 = vpack.c.b16 %v1962, %v1958
        %v2087 = vpack.c.b16 %v1963, %v1959
        %v2088 = vpack.c.b16 %v1964, %v1960
        %v2089 = vpack.c.b16 %v1969, %v1965
        %v2090 = vpack.c.b16 %v1970, %v1966
        %v2091 = vpack.c.b16 %v1971, %v1967
        %v2092 = vpack.c.b16 %v1972, %v1968
        %v2093 = vpack.c.b16 %v1977, %v1973
        %v2094 = vpack.c.b16 %v1978, %v1974
        %v2095 = vpack.c.b16 %v1979, %v1975
        %v2096 = vpack.c.b16 %v1980, %v1976
        %v2097 = vpack.c.b16 %v1985, %v1981
        %v2098 = vpack.c.b16 %v1986, %v1982
        %v2099 = vpack.c.b16 %v1987, %v1983
        %v2100 = vpack.c.b16 %v1988, %v1984
        %v2101 = vpack.c.b16 %v1993, %v1989
        %v2102 = vpack.c.b16 %v1994, %v1990
        %v2103 = vpack.c.b16 %v1995, %v1991
        %v2104 = vpack.c.b16 %v1996, %v1992
        %v2105 = vpack.c.b16 %v2001, %v1997
        %v2106 = vpack.c.b16 %v2002, %v1998
        %v2107 = vpack.c.b16 %v2003, %v1999
        %v2108 = vpack.c.b16 %v2004, %v2000
        %v2109 = vpack.c.b16 %v2009, %v2005
        %v2110 = vpack.c.b16 %v2010, %v2006
        %v2111 = vpack.c.b16 %v2011, %v2007
        %v2112 = vpack.c.b16 %v2012, %v2008
        %v2113 = vpack.c.b16 %v2017, %v2013
        %v2114 = vpack.c.b16 %v2018, %v2014
        %v2115 = vpack.c.b16 %v2019, %v2015
        %v2116 = vpack.c.b16 %v2020, %v2016
        %v2117 = vpack.c.b16 %v2025, %v2021
        %v2118 = vpack.c.b16 %v2026, %v2022
        %v2119 = vpack.c.b16 %v2027, %v2023
        %v2120 = vpack.c.b16 %v2028, %v2024
        %v2121 = vpack.c.b16 %v2033, %v2029
        %v2122 = vpack.c.b16 %v2034, %v2030
        %v2123 = vpack.c.b16 %v2035, %v2031
        %v2124 = vpack.c.b16 %v2036, %v2032
        %v2125 = vpack.c.b16 %v2041, %v2037
        %v2126 = vpack.c.b16 %v2042, %v2038
        %v2127 = vpack.c.b16 %v2043, %v2039
        %v2128 = vpack.c.b16 %v2044, %v2040
        %v2129 = vpack.c.b16 %v2049, %v2045
        %v2130 = vpack.c.b16 %v2050, %v2046
        %v2131 = vpack.c.b16 %v2051, %v2047
        %v2132 = vpack.c.b16 %v2052, %v2048
        %v2133 = vpack.c.b16 %v2057, %v2053
        %v2134 = vpack.c.b16 %v2058, %v2054
        %v2135 = vpack.c.b16 %v2059, %v2055
        %v2136 = vpack.c.b16 %v2060, %v2056
        %v2137 = vpack.c.b16 %v2065, %v2061
        %v2138 = vpack.c.b16 %v2066, %v2062
        %v2139 = vpack.c.b16 %v2067, %v2063
        %v2140 = vpack.c.b16 %v2068, %v2064
        %v2141 = vpack.c.b16 %v2073, %v2069
        %v2142 = vpack.c.b16 %v2074, %v2070
        %v2143 = vpack.c.b16 %v2075, %v2071
        %v2144 = vpack.c.b16 %v2076, %v2072
        %v2145 = vpack.c.b16 %v2081, %v2077
        %v2146 = vpack.c.b16 %v2082, %v2078
        %v2147 = vpack.c.b16 %v2083, %v2079
        %v2148 = vpack.c.b16 %v2084, %v2080
        %v2214 = vlaneseq
        %v2215 = vshrl.u32 %v2214, 7
        %v2216 = vsub.s32 0, %v2215
        %v2217 = vrot.slane %v1892, %v2216
        %v2218 = vlaneseq
        %v2219 = vshrl.u32 %v2218, 7
        %v2220 = vsub.s32 1, %v2219
        %v2221 = vrot.slane %v1892, %v2220
        %v2222 = vlaneseq
        %v2223 = vshrl.u32 %v2222, 7
        %v2224 = vsub.s32 2, %v2223
        %v2225 = vrot.slane %v1892, %v2224
        %v2226 = vlaneseq
        %v2227 = vshrl.u32 %v2226, 7
        %v2228 = vsub.s32 3, %v2227
        %v2229 = vrot.slane %v1892, %v2228
        %2234 = vmatprep.subr.bf16.mxu0 %v2086
        %2235 = vmatpush1.bf16.msra.mxu0 %v2085
        %2236 = vmatprep.subr.bf16.mxu0 %v2090
        %2237 = vmatpush1.bf16.msra.mxu0 %v2089
        %2238 = vmatprep.subr.bf16.mxu0 %v2094
        %2239 = vmatpush1.bf16.msra.mxu0 %v2093
        %2240 = vmatprep.subr.bf16.mxu0 %v2098
        %2241 = vmatpush1.bf16.msra.mxu0 %v2097
        %2242 = vmatprep.subr.bf16.mxu0 %v2102
        %2243 = vmatpush1.bf16.msra.mxu0 %v2101
        %2244 = vmatprep.subr.bf16.mxu0 %v2106
        %2245 = vmatpush1.bf16.msra.mxu0 %v2105
        %2246 = vmatprep.subr.bf16.mxu0 %v2110
        %2247 = vmatpush1.bf16.msra.mxu0 %v2109
        %2248 = vmatprep.subr.bf16.mxu0 %v2114
        %2249 = vmatpush1.bf16.msra.mxu0 %v2113
        %2250 = vmatprep.subr.bf16.mxu0 %v2118
        %2251 = vmatpush1.bf16.msra.mxu0 %v2117
        %2252 = vmatprep.subr.bf16.mxu0 %v2122
        %2253 = vmatpush1.bf16.msra.mxu0 %v2121
        %2254 = vmatprep.subr.bf16.mxu0 %v2126
        %2255 = vmatpush1.bf16.msra.mxu0 %v2125
        %2256 = vmatprep.subr.bf16.mxu0 %v2130
        %2257 = vmatpush1.bf16.msra.mxu0 %v2129
        %2258 = vmatprep.subr.bf16.mxu0 %v2134
        %2259 = vmatpush1.bf16.msra.mxu0 %v2133
        %2260 = vmatprep.subr.bf16.mxu0 %v2138
        %2261 = vmatpush1.bf16.msra.mxu0 %v2137
        %2262 = vmatprep.subr.bf16.mxu0 %v2142
        %2263 = vmatpush1.bf16.msra.mxu0 %v2141
        %2264 = vmatprep.subr.bf16.mxu0 %v2146
        %2265 = vmatpush1.bf16.msra.mxu0 %v2145
        %2266 = vmatprep.mubr.bf16.mxu0 %v1827
        %2267 = vmatmul.mubr.bf16.gmra.mrb[0].mxu0 %v1810
        %v2268 = vpop.f32.mrb[0].mxu0
        %v2269 = vadd.f32 %v2217, %v2268
        %v2270 = vpop.f32.mrb[0].mxu0
        %v2271 = vadd.f32 %v2221, %v2270
        %v2272 = vpop.f32.mrb[0].mxu0
        %v2273 = vpop.f32.mrb[0].mxu0
        %2274 = vdwg.mxu0
        %2275 = vmatprep.subr.bf16.mxu0 %v2088
        %2276 = vmatpush1.bf16.msra.mxu0 %v2087
        %2277 = vmatprep.subr.bf16.mxu0 %v2092
        %2278 = vmatpush1.bf16.msra.mxu0 %v2091
        %2279 = vmatprep.subr.bf16.mxu0 %v2096
        %2280 = vmatpush1.bf16.msra.mxu0 %v2095
        %2281 = vmatprep.subr.bf16.mxu0 %v2100
        %2282 = vmatpush1.bf16.msra.mxu0 %v2099
        %2283 = vmatprep.subr.bf16.mxu0 %v2104
        %2284 = vmatpush1.bf16.msra.mxu0 %v2103
        %2285 = vmatprep.subr.bf16.mxu0 %v2108
        %2286 = vmatpush1.bf16.msra.mxu0 %v2107
        %2287 = vmatprep.subr.bf16.mxu0 %v2112
        %2288 = vmatpush1.bf16.msra.mxu0 %v2111
        %2289 = vmatprep.subr.bf16.mxu0 %v2116
        %2290 = vmatpush1.bf16.msra.mxu0 %v2115
        %2291 = vmatprep.subr.bf16.mxu0 %v2120
        %2292 = vmatpush1.bf16.msra.mxu0 %v2119
        %2293 = vmatprep.subr.bf16.mxu0 %v2124
        %2294 = vmatpush1.bf16.msra.mxu0 %v2123
        %2295 = vmatprep.subr.bf16.mxu0 %v2128
        %2296 = vmatpush1.bf16.msra.mxu0 %v2127
        %2297 = vmatprep.subr.bf16.mxu0 %v2132
        %2298 = vmatpush1.bf16.msra.mxu0 %v2131
        %2299 = vmatprep.subr.bf16.mxu0 %v2136
        %2300 = vmatpush1.bf16.msra.mxu0 %v2135
        %2301 = vmatprep.subr.bf16.mxu0 %v2140
        %2302 = vmatpush1.bf16.msra.mxu0 %v2139
        %2303 = vmatprep.subr.bf16.mxu0 %v2144
        %2304 = vmatpush1.bf16.msra.mxu0 %v2143
        %2305 = vmatprep.subr.bf16.mxu0 %v2148
        %2306 = vmatpush1.bf16.msra.mxu0 %v2147
        %2307 = vmatprep.mubr.bf16.mxu0 %v1827
        %2308 = vmatmul.mubr.bf16.gmra.mrb[0].mxu0 %v1810
        %v2309 = vpop.f32.mrb[0].mxu0
        %v2310 = vadd.f32 %v2225, %v2309
        %v2311 = vpop.f32.mrb[0].mxu0
        %v2312 = vadd.f32 %v2229, %v2311
        %v2313 = vpop.f32.mrb[0].mxu0
        %v2314 = vpop.f32.mrb[0].mxu0
        %2315 = vdwg.mxu0
        %v2316 = vmax.f32 %v2269, 0.0
        %v2317 = vmax.f32 %v2271, 0.0
        %v2318 = vmax.f32 %v2310, 0.0
        %v2319 = vmax.f32 %v2312, 0.0
        %v2320 = vpack.c.bf16 %v2316, %v2316
        %v2321 = vpack.c.bf16 %v2317, %v2317
        %v2322 = vpack.c.bf16 %v2318, %v2318
        %v2323 = vpack.c.bf16 %v2319, %v2319
        %v2324 = vld [vmem:[#allocation15] sm:$0xf]
        %v2325 = vld [vmem:[#allocation15 + $0x4] sm:$0xf]
        %v2326 = vld [vmem:[#allocation15 + $0x8] sm:$0xf]
        %v2327 = vld [vmem:[#allocation15 + $0xc] sm:$0xf]
        %v2328 = vld [vmem:[#allocation15 + $0x10] sm:$0xf]
        %v2329 = vld [vmem:[#allocation15 + $0x14] sm:$0xf]
        %v2330 = vld [vmem:[#allocation15 + $0x18] sm:$0xf]
        %v2331 = vld [vmem:[#allocation15 + $0x1c] sm:$0xf]
        %v2332 = vld [vmem:[#allocation15 + $0x20] sm:$0xf]
        %v2333 = vld [vmem:[#allocation15 + $0x24] sm:$0xf]
        %v2334 = vld [vmem:[#allocation15 + $0x28] sm:$0xf]
        %v2335 = vld [vmem:[#allocation15 + $0x2c] sm:$0xf]
        %v2336 = vld [vmem:[#allocation15 + $0x30] sm:$0xf]
        %v2337 = vld [vmem:[#allocation15 + $0x34] sm:$0xf]
        %v2338 = vld [vmem:[#allocation15 + $0x38] sm:$0xf]
        %v2339 = vld [vmem:[#allocation15 + $0x3c] sm:$0xf]
        %v2340 = vld [vmem:[#allocation15 + $0x40] sm:$0xf]
        %v2341 = vld [vmem:[#allocation15 + $0x44] sm:$0xf]
        %v2342 = vld [vmem:[#allocation15 + $0x48] sm:$0xf]
        %v2343 = vld [vmem:[#allocation15 + $0x4c] sm:$0xf]
        %v2344 = vld [vmem:[#allocation15 + $0x50] sm:$0xf]
        %v2345 = vld [vmem:[#allocation15 + $0x54] sm:$0xf]
        %v2346 = vld [vmem:[#allocation15 + $0x58] sm:$0xf]
        %v2347 = vld [vmem:[#allocation15 + $0x5c] sm:$0xf]
        %v2348 = vld [vmem:[#allocation15 + $0x60] sm:$0xf]
        %v2349 = vld [vmem:[#allocation15 + $0x64] sm:$0xf]
        %v2350 = vld [vmem:[#allocation15 + $0x68] sm:$0xf]
        %v2351 = vld [vmem:[#allocation15 + $0x6c] sm:$0xf]
        %v2352 = vld [vmem:[#allocation15 + $0x70] sm:$0xf]
        %v2353 = vld [vmem:[#allocation15 + $0x74] sm:$0xf]
        %v2354 = vld [vmem:[#allocation15 + $0x78] sm:$0xf]
        %v2355 = vld [vmem:[#allocation15 + $0x7c] sm:$0xf]
        %v2356 = vld [vmem:[#allocation15 + $0x80] sm:$0xf]
        %v2357 = vld [vmem:[#allocation15 + $0x84] sm:$0xf]
        %v2358 = vld [vmem:[#allocation15 + $0x88] sm:$0xf]
        %v2359 = vld [vmem:[#allocation15 + $0x8c] sm:$0xf]
        %v2360 = vld [vmem:[#allocation15 + $0x90] sm:$0xf]
        %v2361 = vld [vmem:[#allocation15 + $0x94] sm:$0xf]
        %v2362 = vld [vmem:[#allocation15 + $0x98] sm:$0xf]
        %v2363 = vld [vmem:[#allocation15 + $0x9c] sm:$0xf]
        %v2364 = vld [vmem:[#allocation15 + $0xa0] sm:$0xf]
        %v2365 = vld [vmem:[#allocation15 + $0xa4] sm:$0xf]
        %v2366 = vld [vmem:[#allocation15 + $0xa8] sm:$0xf]
        %v2367 = vld [vmem:[#allocation15 + $0xac] sm:$0xf]
        %v2368 = vld [vmem:[#allocation15 + $0xb0] sm:$0xf]
        %v2369 = vld [vmem:[#allocation15 + $0xb4] sm:$0xf]
        %v2370 = vld [vmem:[#allocation15 + $0xb8] sm:$0xf]
        %v2371 = vld [vmem:[#allocation15 + $0xbc] sm:$0xf]
        %v2372 = vld [vmem:[#allocation15 + $0xc0] sm:$0xf]
        %v2373 = vld [vmem:[#allocation15 + $0xc4] sm:$0xf]
        %v2374 = vld [vmem:[#allocation15 + $0xc8] sm:$0xf]
        %v2375 = vld [vmem:[#allocation15 + $0xcc] sm:$0xf]
        %v2376 = vld [vmem:[#allocation15 + $0xd0] sm:$0xf]
        %v2377 = vld [vmem:[#allocation15 + $0xd4] sm:$0xf]
        %v2378 = vld [vmem:[#allocation15 + $0xd8] sm:$0xf]
        %v2379 = vld [vmem:[#allocation15 + $0xdc] sm:$0xf]
        %v2380 = vld [vmem:[#allocation15 + $0xe0] sm:$0xf]
        %v2381 = vld [vmem:[#allocation15 + $0xe4] sm:$0xf]
        %v2382 = vld [vmem:[#allocation15 + $0xe8] sm:$0xf]
        %v2383 = vld [vmem:[#allocation15 + $0xec] sm:$0xf]
        %v2384 = vld [vmem:[#allocation15 + $0xf0] sm:$0xf]
        %v2385 = vld [vmem:[#allocation15 + $0xf4] sm:$0xf]
        %v2386 = vld [vmem:[#allocation15 + $0xf8] sm:$0xf]
        %v2387 = vld [vmem:[#allocation15 + $0xfc] sm:$0xf]
        %v2388 = vld [vmem:[%s12] sm:$0x1]
        %v2453 = vunpack.c.l.b16 %v2324
        %v2454 = vunpack.c.l.b16 %v2325
        %v2455 = vunpack.c.l.b16 %v2326
        %v2456 = vunpack.c.l.b16 %v2327
        %v2457 = vunpack.c.l.b16 %v2328
        %v2458 = vunpack.c.l.b16 %v2329
        %v2459 = vunpack.c.l.b16 %v2330
        %v2460 = vunpack.c.l.b16 %v2331
        %v2461 = vunpack.c.l.b16 %v2332
        %v2462 = vunpack.c.l.b16 %v2333
        %v2463 = vunpack.c.l.b16 %v2334
        %v2464 = vunpack.c.l.b16 %v2335
        %v2465 = vunpack.c.l.b16 %v2336
        %v2466 = vunpack.c.l.b16 %v2337
        %v2467 = vunpack.c.l.b16 %v2338
        %v2468 = vunpack.c.l.b16 %v2339
        %v2469 = vunpack.c.l.b16 %v2340
        %v2470 = vunpack.c.l.b16 %v2341
        %v2471 = vunpack.c.l.b16 %v2342
        %v2472 = vunpack.c.l.b16 %v2343
        %v2473 = vunpack.c.l.b16 %v2344
        %v2474 = vunpack.c.l.b16 %v2345
        %v2475 = vunpack.c.l.b16 %v2346
        %v2476 = vunpack.c.l.b16 %v2347
        %v2477 = vunpack.c.l.b16 %v2348
        %v2478 = vunpack.c.l.b16 %v2349
        %v2479 = vunpack.c.l.b16 %v2350
        %v2480 = vunpack.c.l.b16 %v2351
        %v2481 = vunpack.c.l.b16 %v2352
        %v2482 = vunpack.c.l.b16 %v2353
        %v2483 = vunpack.c.l.b16 %v2354
        %v2484 = vunpack.c.l.b16 %v2355
        %v2485 = vunpack.c.l.b16 %v2356
        %v2486 = vunpack.c.l.b16 %v2357
        %v2487 = vunpack.c.l.b16 %v2358
        %v2488 = vunpack.c.l.b16 %v2359
        %v2489 = vunpack.c.l.b16 %v2360
        %v2490 = vunpack.c.l.b16 %v2361
        %v2491 = vunpack.c.l.b16 %v2362
        %v2492 = vunpack.c.l.b16 %v2363
        %v2493 = vunpack.c.l.b16 %v2364
        %v2494 = vunpack.c.l.b16 %v2365
        %v2495 = vunpack.c.l.b16 %v2366
        %v2496 = vunpack.c.l.b16 %v2367
        %v2497 = vunpack.c.l.b16 %v2368
        %v2498 = vunpack.c.l.b16 %v2369
        %v2499 = vunpack.c.l.b16 %v2370
        %v2500 = vunpack.c.l.b16 %v2371
        %v2501 = vunpack.c.l.b16 %v2372
        %v2502 = vunpack.c.l.b16 %v2373
        %v2503 = vunpack.c.l.b16 %v2374
        %v2504 = vunpack.c.l.b16 %v2375
        %v2505 = vunpack.c.l.b16 %v2376
        %v2506 = vunpack.c.l.b16 %v2377
        %v2507 = vunpack.c.l.b16 %v2378
        %v2508 = vunpack.c.l.b16 %v2379
        %v2509 = vunpack.c.l.b16 %v2380
        %v2510 = vunpack.c.l.b16 %v2381
        %v2511 = vunpack.c.l.b16 %v2382
        %v2512 = vunpack.c.l.b16 %v2383
        %v2513 = vunpack.c.l.b16 %v2384
        %v2514 = vunpack.c.l.b16 %v2385
        %v2515 = vunpack.c.l.b16 %v2386
        %v2516 = vunpack.c.l.b16 %v2387
        %v2517 = vpack.c.b16 %v2454, %v2453
        %v2518 = vpack.c.b16 %v2456, %v2455
        %v2519 = vpack.c.b16 %v2458, %v2457
        %v2520 = vpack.c.b16 %v2460, %v2459
        %v2521 = vpack.c.b16 %v2462, %v2461
        %v2522 = vpack.c.b16 %v2464, %v2463
        %v2523 = vpack.c.b16 %v2466, %v2465
        %v2524 = vpack.c.b16 %v2468, %v2467
        %v2525 = vpack.c.b16 %v2470, %v2469
        %v2526 = vpack.c.b16 %v2472, %v2471
        %v2527 = vpack.c.b16 %v2474, %v2473
        %v2528 = vpack.c.b16 %v2476, %v2475
        %v2529 = vpack.c.b16 %v2478, %v2477
        %v2530 = vpack.c.b16 %v2480, %v2479
        %v2531 = vpack.c.b16 %v2482, %v2481
        %v2532 = vpack.c.b16 %v2484, %v2483
        %v2533 = vpack.c.b16 %v2486, %v2485
        %v2534 = vpack.c.b16 %v2488, %v2487
        %v2535 = vpack.c.b16 %v2490, %v2489
        %v2536 = vpack.c.b16 %v2492, %v2491
        %v2537 = vpack.c.b16 %v2494, %v2493
        %v2538 = vpack.c.b16 %v2496, %v2495
        %v2539 = vpack.c.b16 %v2498, %v2497
        %v2540 = vpack.c.b16 %v2500, %v2499
        %v2541 = vpack.c.b16 %v2502, %v2501
        %v2542 = vpack.c.b16 %v2504, %v2503
        %v2543 = vpack.c.b16 %v2506, %v2505
        %v2544 = vpack.c.b16 %v2508, %v2507
        %v2545 = vpack.c.b16 %v2510, %v2509
        %v2546 = vpack.c.b16 %v2512, %v2511
        %v2547 = vpack.c.b16 %v2514, %v2513
        %v2548 = vpack.c.b16 %v2516, %v2515
        %2581 = vmatprep.subr.bf16.mxu0 0
        %2582 = vmatpush1.bf16.msra.mxu0 %v2517
        %2583 = vmatprep.subr.bf16.mxu0 0
        %2584 = vmatpush1.bf16.msra.mxu0 %v2518
        %2585 = vmatprep.subr.bf16.mxu0 0
        %2586 = vmatpush1.bf16.msra.mxu0 %v2519
        %2587 = vmatprep.subr.bf16.mxu0 0
        %2588 = vmatpush1.bf16.msra.mxu0 %v2520
        %2589 = vmatprep.subr.bf16.mxu0 0
        %2590 = vmatpush1.bf16.msra.mxu0 %v2521
        %2591 = vmatprep.subr.bf16.mxu0 0
        %2592 = vmatpush1.bf16.msra.mxu0 %v2522
        %2593 = vmatprep.subr.bf16.mxu0 0
        %2594 = vmatpush1.bf16.msra.mxu0 %v2523
        %2595 = vmatprep.subr.bf16.mxu0 0
        %2596 = vmatpush1.bf16.msra.mxu0 %v2524
        %2597 = vmatprep.subr.bf16.mxu0 0
        %2598 = vmatpush1.bf16.msra.mxu0 %v2525
        %2599 = vmatprep.subr.bf16.mxu0 0
        %2600 = vmatpush1.bf16.msra.mxu0 %v2526
        %2601 = vmatprep.subr.bf16.mxu0 0
        %2602 = vmatpush1.bf16.msra.mxu0 %v2527
        %2603 = vmatprep.subr.bf16.mxu0 0
        %2604 = vmatpush1.bf16.msra.mxu0 %v2528
        %2605 = vmatprep.subr.bf16.mxu0 0
        %2606 = vmatpush1.bf16.msra.mxu0 %v2529
        %2607 = vmatprep.subr.bf16.mxu0 0
        %2608 = vmatpush1.bf16.msra.mxu0 %v2530
        %2609 = vmatprep.subr.bf16.mxu0 0
        %2610 = vmatpush1.bf16.msra.mxu0 %v2531
        %2611 = vmatprep.subr.bf16.mxu0 0
        %2612 = vmatpush1.bf16.msra.mxu0 %v2532
        %2613 = vmatprep.mubr.bf16.mxu0 %v2321
        %2614 = vmatmul.mubr.bf16.gmra.mrb[0].mxu0 %v2320
        %v2615 = vpop.f32.mrb[0].mxu0
        %v2616 = vadd.f32 %v2388, %v2615
        %v2617 = vpop.f32.mrb[0].mxu0
        %v2618 = vpop.f32.mrb[0].mxu0
        %v2619 = vpop.f32.mrb[0].mxu0
        %2620 = vdwg.mxu0
        %2621 = vmatprep.subr.bf16.mxu0 0
        %2622 = vmatpush1.bf16.msra.mxu0 %v2533
        %2623 = vmatprep.subr.bf16.mxu0 0
        %2624 = vmatpush1.bf16.msra.mxu0 %v2534
        %2625 = vmatprep.subr.bf16.mxu0 0
        %2626 = vmatpush1.bf16.msra.mxu0 %v2535
        %2627 = vmatprep.subr.bf16.mxu0 0
        %2628 = vmatpush1.bf16.msra.mxu0 %v2536
        %2629 = vmatprep.subr.bf16.mxu0 0
        %2630 = vmatpush1.bf16.msra.mxu0 %v2537
        %2631 = vmatprep.subr.bf16.mxu0 0
        %2632 = vmatpush1.bf16.msra.mxu0 %v2538
        %2633 = vmatprep.subr.bf16.mxu0 0
        %2634 = vmatpush1.bf16.msra.mxu0 %v2539
        %2635 = vmatprep.subr.bf16.mxu0 0
        %2636 = vmatpush1.bf16.msra.mxu0 %v2540
        %2637 = vmatprep.subr.bf16.mxu0 0
        %2638 = vmatpush1.bf16.msra.mxu0 %v2541
        %2639 = vmatprep.subr.bf16.mxu0 0
        %2640 = vmatpush1.bf16.msra.mxu0 %v2542
        %2641 = vmatprep.subr.bf16.mxu0 0
        %2642 = vmatpush1.bf16.msra.mxu0 %v2543
        %2643 = vmatprep.subr.bf16.mxu0 0
        %2644 = vmatpush1.bf16.msra.mxu0 %v2544
        %2645 = vmatprep.subr.bf16.mxu0 0
        %2646 = vmatpush1.bf16.msra.mxu0 %v2545
        %2647 = vmatprep.subr.bf16.mxu0 0
        %2648 = vmatpush1.bf16.msra.mxu0 %v2546
        %2649 = vmatprep.subr.bf16.mxu0 0
        %2650 = vmatpush1.bf16.msra.mxu0 %v2547
        %2651 = vmatprep.subr.bf16.mxu0 0
        %2652 = vmatpush1.bf16.msra.mxu0 %v2548
        %2653 = vmatprep.mubr.bf16.mxu0 %v2323
        %2654 = vmatmul.mubr.bf16.gmra.mrb[0].mxu0 %v2322
        %v2655 = vpop.f32.mrb[0].mxu0
        %v2656 = vadd.f32 %v2616, %v2655
        %v2657 = vpop.f32.mrb[0].mxu0
        %v2658 = vpop.f32.mrb[0].mxu0
        %v2659 = vpop.f32.mrb[0].mxu0
        %2660 = vdwg.mxu0
        %v2661 = vlaneseq
        %v2662 = vand.u32 %v2661, 127
        %vm2663 = vcmp.lt.s32.totalorder %v2662, 1
        %v2664 = vsel %vm2663, %v2656, -inf
        %vm2665 = vcmask 1040384
        %v2666 = vsel %vm2665, %v2664, -inf
        %2667 = vmax.xlane.f32.xlu0 %v2666
        %v2668 = vpop.xlane.xlu0 %2667
        %v2669 = vsub.f32 %v2664, %v2668
        %v2670 = vmul.f32 %v2669, 1.442695
        %v2671 = vpow.pop %v2670
        %v2672 = vsel %vm2665, %v2671, 0.0
        %2673 = vadd.xlane.f32.xlu0 %v2672
        %v2674 = vpop.xlane.xlu0 %2673
        %v2675 = vrcp.pop %v2674
        %v2676 = vmul.f32 %v2671, %v2675
        %2677 = vst [vmem:[%s547] sm:$0x1] %v2676
        %s2678 = sand.u32 %s309, 1
        %s2679 = scalar_lea.sflag [#allocation6], %s2678
        %s2680 = sand.u32 %s309, 1
        %s2681 = scalar_lea.vmem [#allocation16], %s2680
        // Predicated region
        $region97: #{tpu_custom_call.1} parent=67 // pred_check
          %p2682 = pneg %p319
        $region98: #{tpu_custom_call.1} parent=67 // pred_check_branch
          %2684 = sbr.rel (%p2682) target = $region100
        $region99: #{tpu_custom_call.1} parent=67 // pred_region
          %s2686 = ssub.s32 16, 16
          %2687 = vsyncadd %s2679, %s2686
          %s2688 = smul.addr %s39, 16
          %s2689 = scalar_lea.hbm %s13, %s2688
          %s2691 = sshll.u32 %s2681, 4
          %s2692 = int_to_ptr.vmem [resolvable:$true] %s2691
          %2694 = dma.vmem_to_hbm [thread:$0]  %s2692, 16, %s2689, %s2679
        $region100: #{tpu_custom_call.1} parent=67 // pred_fallthru
          _
      $region68: #{tpu_custom_call.1} parent=5 // pred_fallthru
        _
      %p2695 = scmp.le.s32.totalorder 2, %s34
      // Predicated region
      $region101: #{tpu_custom_call.1} parent=5 // pred_check
        %p2696 = pneg %p2695
      $region102: #{tpu_custom_call.1} parent=5 // pred_check_branch
        %2698 = sbr.rel (%p2696) target = $region104
      $region103: #{tpu_custom_call.1} parent=5 // pred_region
        %s2699 = ssub.s32 %s34, 2
        // Predicated region
        $region105: #{tpu_custom_call.1} parent=103 // pred_check
          %p2700 = pneg %p325
        $region106: #{tpu_custom_call.1} parent=103 // pred_check_branch
          %2702 = sbr.rel (%p2700) target = $region108
        $region107: #{tpu_custom_call.1} parent=103 // pred_region
          %s2703 = sand.u32 %s310, 1
          %s2704 = scalar_lea.sflag [#allocation6], %s2703
          %s2705 = sand.u32 %s310, 1
          %s2706 = scalar_lea.vmem [#allocation16], %s2705
          %2707 = dma.done %s2704, 16
        $region108: #{tpu_custom_call.1} parent=103 // pred_fallthru
          _
      $region104: #{tpu_custom_call.1} parent=5 // pred_fallthru
        _
    $region6: #{tpu_custom_call.1} parent=1 // loop_footer
      %s38 = sadd.s32 1, %s34
    $region7: #{tpu_custom_call.1} parent=1 // loop_footer_branch
      %33 = sbr.rel target = $region3
    $region8: #{tpu_custom_call.1} parent=1 // loop_exit
      _
    %2708 = vsyncpa [#allocation5], 1
    %s2709 = scalar_lea.sflag [#allocation5], 1
    %2710 = vsyncpa %s2709, 1
    %2711 = vsyncpa [#allocation8], 1
    %s2712 = scalar_lea.sflag [#allocation8], 1
    %2713 = vsyncpa %s2712, 1
    %2714 = vsyncpa [#allocation11], 1
    %2715 = vsyncpa [#allocation14], 1
    %2716 = vsyncpa [#allocation6], 1
    %s2717 = scalar_lea.sflag [#allocation6], 1
    %2718 = vsyncpa %s2717, 1

</llo_original>
